<compile_context>
chip_gen: v5e
topology: v5e:2x2
jax: 0.10.0
libtpu: 0.0.40
codegen_flags: <defaults>
</compile_context>

<pallas_src>
import functools

import jax
import jax.numpy as jnp
from jax.experimental import pallas as pl
from jax.experimental.pallas import tpu as pltpu


# ----------------------------------------------------------------------------
# Fused kernel: all LSTM layers + FC in one pallas_call (single grid step).
# ----------------------------------------------------------------------------
def _make_fused_lstm_fc_kernel(num_layers, T, B, H):
    G = 4 * H

    def kernel(*refs):
        x_ref = refs[0]                               # bf16 (T*B, Din)
        layer_refs = refs[1:1 + 3 * num_layers]       # per layer: wih, whh, bias
        fcw_ref = refs[1 + 3 * num_layers]            # bf16 (H, C_pad)
        fcb_ref = refs[2 + 3 * num_layers]            # f32  (1, C_pad)
        out_ref = refs[3 + 3 * num_layers]            # f32  (N, C_pad)
        seq_scr = refs[4 + 3 * num_layers]            # bf16 (T*B, H) inter-layer hseq
        hn_scr = refs[5 + 3 * num_layers]             # bf16 (N, H)   stacked h_n
        xp_scr = refs[6 + 3 * num_layers]             # f32  (T*B, G) staged xproj

        # Lane mask selecting the cell-candidate ("g") gate columns; hoisted
        # out of all loops (broadcast_in_dim is not CSE'd by JAX).
        lane = jax.lax.broadcasted_iota(jnp.int32, (B, G), 1)
        g_mask = jnp.logical_and(lane >= 2 * H, lane < 3 * H)
        half = jnp.float32(0.5)

        for l in range(num_layers):
            wih = layer_refs[3 * l][...]              # bf16 (Din_l, 4H)
            whh = layer_refs[3 * l + 1][...]          # bf16 (H, 4H)
            bias = layer_refs[3 * l + 2][...]         # f32  (1, 4H)

            if l == 0:
                inp = x_ref[...]                      # bf16 (T*B, Din)
            else:
                inp = seq_scr[...]                    # bf16 (T*B, H), no cast

            # Hoisted input projection for all timesteps: one well-shaped MXU
            # matmul (T*B rows) outside the serial recurrence; staged in VMEM
            # so per-step reads are plain vlds, not register relayouts.
            xp_scr[...] = jnp.dot(inp, wih,
                                  preferred_element_type=jnp.float32) + bias

            h_b = jnp.zeros((B, H), jnp.bfloat16)     # recurrent MXU operand
            c = jnp.zeros((B, H), jnp.float32)        # cell state stays fp32
            for t in range(T):  # fully unrolled serial recurrence
                gates = xp_scr[t * B:(t + 1) * B, :] + jnp.dot(
                    h_b, whh, preferred_element_type=jnp.float32)  # f32 (B,4H)

                # Single-tanh activation over the full 4H-lane row:
                #   sigmoid(x) = 0.5*(tanh(x/2) + 1)
                y = jnp.where(g_mask, gates, half * gates)
                th = jnp.tanh(y)                      # one EUP pass per step
                act = jnp.where(g_mask, th, half * th + half)

                i_g = act[:, 0 * H:1 * H]
                f_g = act[:, 1 * H:2 * H]
                g_g = act[:, 2 * H:3 * H]
                o_g = act[:, 3 * H:4 * H]
                c = f_g * c + i_g * g_g
                h = o_g * jnp.tanh(c)
                h_b = h.astype(jnp.bfloat16)          # single cast, reused
                if l < num_layers - 1:
                    seq_scr[t * B:(t + 1) * B, :] = h_b   # feeds next layer
            hn_scr[l * B:(l + 1) * B, :] = h_b        # h_n for this layer

        # Final FC on stacked h_n -> lane-dense (128-wide) padded logits.
        logits = jnp.dot(hn_scr[...], fcw_ref[...],
                         preferred_element_type=jnp.float32) + fcb_ref[...]
        out_ref[...] = logits.astype(out_ref.dtype)

    return kernel


# ----------------------------------------------------------------------------
# Wrapper
# ----------------------------------------------------------------------------
@functools.partial(jax.jit, static_argnames=("num_layers",))
def lstm_model_forward(x, params, num_layers):
    """x: [B, T, D] (batch_first, like PyTorch). Returns [num_layers*B, C]."""
    B, T, Din = x.shape
    H = params["layers"][0][1].shape[0]    # w_hh_t is (H, 4H)
    G = 4 * H
    C = params["fc_w_t"].shape[1]
    C_pad = max(128, ((C + 127) // 128) * 128)
    N = num_layers * B

    # Time-major, flattened to (T*B, Din); matmul operands in bf16.
    x2d = jnp.transpose(x, (1, 0, 2)).reshape(T * B, Din).astype(jnp.bfloat16)

    inputs = [x2d]
    in_specs = [pl.BlockSpec((T * B, Din), lambda i: (0, 0))]
    for l in range(num_layers):
        w_ih_t, w_hh_t, bias = params["layers"][l]
        d_in = w_ih_t.shape[0]
        inputs += [w_ih_t.astype(jnp.bfloat16),
                   w_hh_t.astype(jnp.bfloat16),
                   bias.reshape(1, G).astype(jnp.float32)]
        in_specs += [pl.BlockSpec((d_in, G), lambda i: (0, 0)),
                     pl.BlockSpec((H, G), lambda i: (0, 0)),
                     pl.BlockSpec((1, G), lambda i: (0, 0))]

    # FC weights padded to a lane-dense 128-wide output slab.
    fcw_p = jnp.zeros((H, C_pad), jnp.bfloat16).at[:, :C].set(
        params["fc_w_t"].astype(jnp.bfloat16))
    fcb_p = jnp.zeros((1, C_pad), jnp.float32).at[0, :C].set(params["fc_b"])
    inputs += [fcw_p, fcb_p]
    in_specs += [pl.BlockSpec((H, C_pad), lambda i: (0, 0)),
                 pl.BlockSpec((1, C_pad), lambda i: (0, 0))]

    kernel = _make_fused_lstm_fc_kernel(num_layers, T, B, H)

    out_padded = pl.pallas_call(
        kernel,
        out_shape=jax.ShapeDtypeStruct((N, C_pad), jnp.float32),
        grid=(1,),
        in_specs=in_specs,
        out_specs=pl.BlockSpec((N, C_pad), lambda i: (0, 0)),
        scratch_shapes=[
            pltpu.VMEM((T * B, H), jnp.bfloat16),   # inter-layer hidden seq
            pltpu.VMEM((N, H), jnp.bfloat16),       # stacked h_n
            pltpu.VMEM((T * B, G), jnp.float32),    # staged xproj per layer
        ],
        compiler_params=pltpu.CompilerParams(
            dimension_semantics=("arbitrary",)),
    )(*inputs)
    return out_padded[:, :C]


# ----------------------------------------------------------------------------
# Pure-JAX reference (fp32, lax.scan) for correctness check.
# ----------------------------------------------------------------------------
def reference_forward(x, params, num_layers):
    x_tm = jnp.transpose(x, (1, 0, 2))
    B = x.shape[0]
    last = []
    layer_in = x_tm
    for l in range(num_layers):
        w_ih_t, w_hh_t, bias = params["layers"][l]
        H = w_hh_t.shape[0]

        def step(carry, x_t):
            h, c = carry
            g = x_t @ w_ih_t + h @ w_hh_t + bias
            i = jax.nn.sigmoid(g[:, 0 * H:1 * H])
            f = jax.nn.sigmoid(g[:, 1 * H:2 * H])
            gg = jnp.tanh(g[:, 2 * H:3 * H])
            o = jax.nn.sigmoid(g[:, 3 * H:4 * H])
            c = f * c + i * gg
            h = o * jnp.tanh(c)
            return (h, c), h

        (h, c), hs = jax.lax.scan(
            step, (jnp.zeros((B, H)), jnp.zeros((B, H))), layer_in)
        last.append(h)
        layer_in = hs
    h_n = jnp.stack(last, 0).reshape(-1, last[0].shape[-1])
    return h_n @ params["fc_w_t"] + params["fc_b"]


def init_params(key, num_classes, input_size, hidden_size, num_layers):
    """Deterministic PyTorch-style uniform(-1/sqrt(H), 1/sqrt(H)) init."""
    k = 1.0 / jnp.sqrt(hidden_size)
    layers = []
    for l in range(num_layers):
        d_in = input_size if l == 0 else hidden_size
        key, k1, k2, k3, k4 = jax.random.split(key, 5)
        w_ih = jax.random.uniform(k1, (4 * hidden_size, d_in), minval=-k, maxval=k)
        w_hh = jax.random.uniform(k2, (4 * hidden_size, hidden_size), minval=-k, maxval=k)
        b_ih = jax.random.uniform(k3, (4 * hidden_size,), minval=-k, maxval=k)
        b_hh = jax.random.uniform(k4, (4 * hidden_size,), minval=-k, maxval=k)
        # Kernel uses transposed (in, 4H) weights and a fused bias.
        layers.append((w_ih.T.astype(jnp.float32),
                       w_hh.T.astype(jnp.float32),
                       (b_ih + b_hh).astype(jnp.float32)))
    key, k5, k6 = jax.random.split(key, 3)
    kf = 1.0 / jnp.sqrt(hidden_size)
    fc_w = jax.random.uniform(k5, (num_classes, hidden_size), minval=-kf, maxval=kf)
    fc_b = jax.random.uniform(k6, (num_classes,), minval=-kf, maxval=kf)
    return {
        "layers": layers,
        "fc_w_t": fc_w.T.astype(jnp.float32),
        "fc_b": fc_b.astype(jnp.float32),
    }


if __name__ == "__main__":
    num_classes = 5
    input_size = 4
    hidden_size = 32
    num_layers = 2
    batch = 2
    seq = 8

    key = jax.random.PRNGKey(0)
    key, kx, kp = jax.random.split(key, 3)
    x = jax.random.normal(kx, (batch, seq, input_size), dtype=jnp.float32)
    params = init_params(kp, num_classes, input_size, hidden_size, num_layers)

    out = lstm_model_forward(x, params, num_layers)
    out = jax.block_until_ready(out)

    ref = reference_forward(x, params, num_layers)
    assert out.shape == (num_layers * batch, num_classes), out.shape
    # bf16 MXU operands with fp32 accumulation (and sigmoid-via-tanh) ->
    # compare with loose tolerance; drift grows with T/H.
    max_diff = float(jnp.max(jnp.abs(out - ref)))
    assert jnp.allclose(out, ref, atol=2e-2, rtol=2e-2), (
        f"mismatch vs reference, max abs diff {max_diff}")

    print("KERNEL_OK")
</pallas_src>

<mosaic_0001>
module attributes {stable_mosaic.version = 11 : i64} {
  func.func @kernel(%arg0: i32, %arg1: memref<16x4xbf16, #tpu.memory_space<vmem>>, %arg2: memref<4x128xbf16, #tpu.memory_space<vmem>>, %arg3: memref<32x128xbf16, #tpu.memory_space<vmem>>, %arg4: memref<1x128xf32, #tpu.memory_space<vmem>>, %arg5: memref<32x128xbf16, #tpu.memory_space<vmem>>, %arg6: memref<32x128xbf16, #tpu.memory_space<vmem>>, %arg7: memref<1x128xf32, #tpu.memory_space<vmem>>, %arg8: memref<32x128xbf16, #tpu.memory_space<vmem>>, %arg9: memref<1x128xf32, #tpu.memory_space<vmem>>, %arg10: memref<4x128xf32, #tpu.memory_space<vmem>>, %arg11: memref<16x32xbf16, #tpu.memory_space<vmem>>, %arg12: memref<4x32xbf16, #tpu.memory_space<vmem>>, %arg13: memref<16x128xf32, #tpu.memory_space<vmem>>) attributes {dimension_semantics = [#tpu.dimension_semantics<arbitrary>], iteration_bounds = array<i64: 1>, scalar_prefetch = 0 : i64, scratch_operands = 3 : i64, tpu.core_type = #tpu.core_type<tc>, window_params = [{pipeline_mode = #tpu.pipeline_mode<synchronous>, transform_indices = @transform_0, window_bounds = array<i64: 16, 4>}, {pipeline_mode = #tpu.pipeline_mode<synchronous>, transform_indices = @transform_1, window_bounds = array<i64: 4, 128>}, {pipeline_mode = #tpu.pipeline_mode<synchronous>, transform_indices = @transform_2, window_bounds = array<i64: 32, 128>}, {pipeline_mode = #tpu.pipeline_mode<synchronous>, transform_indices = @transform_3, window_bounds = array<i64: 1, 128>}, {pipeline_mode = #tpu.pipeline_mode<synchronous>, transform_indices = @transform_4, window_bounds = array<i64: 32, 128>}, {pipeline_mode = #tpu.pipeline_mode<synchronous>, transform_indices = @transform_5, window_bounds = array<i64: 32, 128>}, {pipeline_mode = #tpu.pipeline_mode<synchronous>, transform_indices = @transform_6, window_bounds = array<i64: 1, 128>}, {pipeline_mode = #tpu.pipeline_mode<synchronous>, transform_indices = @transform_7, window_bounds = array<i64: 32, 128>}, {pipeline_mode = #tpu.pipeline_mode<synchronous>, transform_indices = @transform_8, window_bounds = array<i64: 1, 128>}, {pipeline_mode = #tpu.pipeline_mode<synchronous>, transform_indices = @transform_9, window_bounds = array<i64: 4, 128>}]} {
    %0 = tpu.iota {dimensions = array<i32: 1>} : vector<2x128xi32>
    %c64_i32 = arith.constant 64 : i32
    %1 = vector.broadcast %c64_i32 : i32 to vector<2x128xi32>
    %2 = arith.cmpi sge, %0, %1 : vector<2x128xi32>
    %c96_i32 = arith.constant 96 : i32
    %3 = vector.broadcast %c96_i32 : i32 to vector<2x128xi32>
    %4 = arith.cmpi slt, %0, %3 : vector<2x128xi32>
    %5 = arith.andi %2, %4 : vector<2x128xi1>
    %c0 = arith.constant 0 : index
    %c0_0 = arith.constant 0 : index
    %6 = vector.load %arg2[%c0, %c0_0] : memref<4x128xbf16, #tpu.memory_space<vmem>>, vector<4x128xbf16>
    %c0_1 = arith.constant 0 : index
    %c0_2 = arith.constant 0 : index
    %7 = vector.load %arg3[%c0_1, %c0_2] : memref<32x128xbf16, #tpu.memory_space<vmem>>, vector<32x128xbf16>
    %c0_3 = arith.constant 0 : index
    %c0_4 = arith.constant 0 : index
    %8 = vector.load %arg4[%c0_3, %c0_4] : memref<1x128xf32, #tpu.memory_space<vmem>>, vector<1x128xf32>
    %c0_5 = arith.constant 0 : index
    %c0_6 = arith.constant 0 : index
    %9 = vector.load %arg1[%c0_5, %c0_6] : memref<16x4xbf16, #tpu.memory_space<vmem>>, vector<16x4xbf16>
    %cst = arith.constant dense<0.000000e+00> : vector<16x128xf32>
    %10 = tpu.matmul %9, %6, %cst {dimension_numbers = #tpu.dot_dimension_numbers<[1], [0], [0], [1], [0, 0, 1, 1], [], []>} : vector<16x4xbf16>, vector<4x128xbf16>, vector<16x128xf32> -> vector<16x128xf32>
    %11 = vector.broadcast %8 : vector<1x128xf32> to vector<16x128xf32>
    %12 = arith.addf %10, %11 : vector<16x128xf32>
    %c0_7 = arith.constant 0 : index
    %c0_8 = arith.constant 0 : index
    %13 = vector.load %arg13[%c0_7, %c0_8] : memref<16x128xf32, #tpu.memory_space<vmem>>, vector<16x128xf32>
    tpu.vector_store %arg13[%c0_7, %c0_8], %12 {strides = array<i32>} : memref<16x128xf32, #tpu.memory_space<vmem>>, vector<16x128xf32>,
    %cst_9 = arith.constant 0.000000e+00 : bf16
    %14 = vector.broadcast %cst_9 : bf16 to vector<2x32xbf16>
    %cst_10 = arith.constant 0.000000e+00 : f32
    %15 = vector.broadcast %cst_10 : f32 to vector<2x32xf32>
    %c0_11 = arith.constant 0 : index
    %c0_12 = arith.constant 0 : index
    %16 = vector.load %arg13[%c0_11, %c0_12] : memref<16x128xf32, #tpu.memory_space<vmem>>, vector<2x128xf32>
    %cst_13 = arith.constant dense<0.000000e+00> : vector<2x128xf32>
    %17 = tpu.matmul %14, %7, %cst_13 {dimension_numbers = #tpu.dot_dimension_numbers<[1], [0], [0], [1], [0, 0, 1, 1], [], []>} : vector<2x32xbf16>, vector<32x128xbf16>, vector<2x128xf32> -> vector<2x128xf32>
    %18 = arith.addf %16, %17 : vector<2x128xf32>
    %cst_14 = arith.constant 5.000000e-01 : f32
    %19 = vector.broadcast %cst_14 : f32 to vector<2x128xf32>
    %20 = arith.mulf %19, %18 : vector<2x128xf32>
    %21 = arith.select %5, %18, %20 : vector<2x128xi1>, vector<2x128xf32>
    %22 = math.tanh %21 : vector<2x128xf32>
    %cst_15 = arith.constant 5.000000e-01 : f32
    %23 = vector.broadcast %cst_15 : f32 to vector<2x128xf32>
    %24 = arith.mulf %23, %22 : vector<2x128xf32>
    %cst_16 = arith.constant 5.000000e-01 : f32
    %25 = vector.broadcast %cst_16 : f32 to vector<2x128xf32>
    %26 = arith.addf %24, %25 : vector<2x128xf32>
    %27 = arith.select %5, %22, %26 : vector<2x128xi1>, vector<2x128xf32>
    %28 = vector.extract_strided_slice %27 {offsets = [0, 0], sizes = [2, 32], strides = [1, 1]} : vector<2x128xf32> to vector<2x32xf32>
    %29 = vector.extract_strided_slice %27 {offsets = [0, 32], sizes = [2, 32], strides = [1, 1]} : vector<2x128xf32> to vector<2x32xf32>
    %30 = vector.extract_strided_slice %27 {offsets = [0, 64], sizes = [2, 32], strides = [1, 1]} : vector<2x128xf32> to vector<2x32xf32>
    %31 = vector.extract_strided_slice %27 {offsets = [0, 96], sizes = [2, 32], strides = [1, 1]} : vector<2x128xf32> to vector<2x32xf32>
    %32 = arith.mulf %29, %15 : vector<2x32xf32>
    %33 = arith.mulf %28, %30 : vector<2x32xf32>
    %34 = arith.addf %32, %33 : vector<2x32xf32>
    %35 = math.tanh %34 : vector<2x32xf32>
    %36 = arith.mulf %31, %35 : vector<2x32xf32>
    %37 = arith.truncf %36 : vector<2x32xf32> to vector<2x32xbf16>
    %c0_17 = arith.constant 0 : index
    %c0_18 = arith.constant 0 : index
    %38 = vector.load %arg11[%c0_17, %c0_18] : memref<16x32xbf16, #tpu.memory_space<vmem>>, vector<2x32xbf16>
    tpu.vector_store %arg11[%c0_17, %c0_18], %37 {strides = array<i32>} : memref<16x32xbf16, #tpu.memory_space<vmem>>, vector<2x32xbf16>,
    %c2 = arith.constant 2 : index
    %c0_19 = arith.constant 0 : index
    %39 = vector.load %arg13[%c2, %c0_19] : memref<16x128xf32, #tpu.memory_space<vmem>>, vector<2x128xf32>
    %cst_20 = arith.constant dense<0.000000e+00> : vector<2x128xf32>
    %40 = tpu.matmul %37, %7, %cst_20 {dimension_numbers = #tpu.dot_dimension_numbers<[1], [0], [0], [1], [0, 0, 1, 1], [], []>} : vector<2x32xbf16>, vector<32x128xbf16>, vector<2x128xf32> -> vector<2x128xf32>
    %41 = arith.addf %39, %40 : vector<2x128xf32>
    %cst_21 = arith.constant 5.000000e-01 : f32
    %42 = vector.broadcast %cst_21 : f32 to vector<2x128xf32>
    %43 = arith.mulf %42, %41 : vector<2x128xf32>
    %44 = arith.select %5, %41, %43 : vector<2x128xi1>, vector<2x128xf32>
    %45 = math.tanh %44 : vector<2x128xf32>
    %cst_22 = arith.constant 5.000000e-01 : f32
    %46 = vector.broadcast %cst_22 : f32 to vector<2x128xf32>
    %47 = arith.mulf %46, %45 : vector<2x128xf32>
    %cst_23 = arith.constant 5.000000e-01 : f32
    %48 = vector.broadcast %cst_23 : f32 to vector<2x128xf32>
    %49 = arith.addf %47, %48 : vector<2x128xf32>
    %50 = arith.select %5, %45, %49 : vector<2x128xi1>, vector<2x128xf32>
    %51 = vector.extract_strided_slice %50 {offsets = [0, 0], sizes = [2, 32], strides = [1, 1]} : vector<2x128xf32> to vector<2x32xf32>
    %52 = vector.extract_strided_slice %50 {offsets = [0, 32], sizes = [2, 32], strides = [1, 1]} : vector<2x128xf32> to vector<2x32xf32>
    %53 = vector.extract_strided_slice %50 {offsets = [0, 64], sizes = [2, 32], strides = [1, 1]} : vector<2x128xf32> to vector<2x32xf32>
    %54 = vector.extract_strided_slice %50 {offsets = [0, 96], sizes = [2, 32], strides = [1, 1]} : vector<2x128xf32> to vector<2x32xf32>
    %55 = arith.mulf %52, %34 : vector<2x32xf32>
    %56 = arith.mulf %51, %53 : vector<2x32xf32>
    %57 = arith.addf %55, %56 : vector<2x32xf32>
    %58 = math.tanh %57 : vector<2x32xf32>
    %59 = arith.mulf %54, %58 : vector<2x32xf32>
    %60 = arith.truncf %59 : vector<2x32xf32> to vector<2x32xbf16>
    %c2_24 = arith.constant 2 : index
    %c0_25 = arith.constant 0 : index
    %61 = vector.load %arg11[%c2_24, %c0_25] : memref<16x32xbf16, #tpu.memory_space<vmem>>, vector<2x32xbf16>
    tpu.vector_store %arg11[%c2_24, %c0_25], %60 {strides = array<i32>} : memref<16x32xbf16, #tpu.memory_space<vmem>>, vector<2x32xbf16>,
    %c4 = arith.constant 4 : index
    %c0_26 = arith.constant 0 : index
    %62 = vector.load %arg13[%c4, %c0_26] : memref<16x128xf32, #tpu.memory_space<vmem>>, vector<2x128xf32>
    %cst_27 = arith.constant dense<0.000000e+00> : vector<2x128xf32>
    %63 = tpu.matmul %60, %7, %cst_27 {dimension_numbers = #tpu.dot_dimension_numbers<[1], [0], [0], [1], [0, 0, 1, 1], [], []>} : vector<2x32xbf16>, vector<32x128xbf16>, vector<2x128xf32> -> vector<2x128xf32>
    %64 = arith.addf %62, %63 : vector<2x128xf32>
    %cst_28 = arith.constant 5.000000e-01 : f32
    %65 = vector.broadcast %cst_28 : f32 to vector<2x128xf32>
    %66 = arith.mulf %65, %64 : vector<2x128xf32>
    %67 = arith.select %5, %64, %66 : vector<2x128xi1>, vector<2x128xf32>
    %68 = math.tanh %67 : vector<2x128xf32>
    %cst_29 = arith.constant 5.000000e-01 : f32
    %69 = vector.broadcast %cst_29 : f32 to vector<2x128xf32>
    %70 = arith.mulf %69, %68 : vector<2x128xf32>
    %cst_30 = arith.constant 5.000000e-01 : f32
    %71 = vector.broadcast %cst_30 : f32 to vector<2x128xf32>
    %72 = arith.addf %70, %71 : vector<2x128xf32>
    %73 = arith.select %5, %68, %72 : vector<2x128xi1>, vector<2x128xf32>
    %74 = vector.extract_strided_slice %73 {offsets = [0, 0], sizes = [2, 32], strides = [1, 1]} : vector<2x128xf32> to vector<2x32xf32>
    %75 = vector.extract_strided_slice %73 {offsets = [0, 32], sizes = [2, 32], strides = [1, 1]} : vector<2x128xf32> to vector<2x32xf32>
    %76 = vector.extract_strided_slice %73 {offsets = [0, 64], sizes = [2, 32], strides = [1, 1]} : vector<2x128xf32> to vector<2x32xf32>
    %77 = vector.extract_strided_slice %73 {offsets = [0, 96], sizes = [2, 32], strides = [1, 1]} : vector<2x128xf32> to vector<2x32xf32>
    %78 = arith.mulf %75, %57 : vector<2x32xf32>
    %79 = arith.mulf %74, %76 : vector<2x32xf32>
    %80 = arith.addf %78, %79 : vector<2x32xf32>
    %81 = math.tanh %80 : vector<2x32xf32>
    %82 = arith.mulf %77, %81 : vector<2x32xf32>
    %83 = arith.truncf %82 : vector<2x32xf32> to vector<2x32xbf16>
    %c4_31 = arith.constant 4 : index
    %c0_32 = arith.constant 0 : index
    %84 = vector.load %arg11[%c4_31, %c0_32] : memref<16x32xbf16, #tpu.memory_space<vmem>>, vector<2x32xbf16>
    tpu.vector_store %arg11[%c4_31, %c0_32], %83 {strides = array<i32>} : memref<16x32xbf16, #tpu.memory_space<vmem>>, vector<2x32xbf16>,
    %c6 = arith.constant 6 : index
    %c0_33 = arith.constant 0 : index
    %85 = vector.load %arg13[%c6, %c0_33] : memref<16x128xf32, #tpu.memory_space<vmem>>, vector<2x128xf32>
    %cst_34 = arith.constant dense<0.000000e+00> : vector<2x128xf32>
    %86 = tpu.matmul %83, %7, %cst_34 {dimension_numbers = #tpu.dot_dimension_numbers<[1], [0], [0], [1], [0, 0, 1, 1], [], []>} : vector<2x32xbf16>, vector<32x128xbf16>, vector<2x128xf32> -> vector<2x128xf32>
    %87 = arith.addf %85, %86 : vector<2x128xf32>
    %cst_35 = arith.constant 5.000000e-01 : f32
    %88 = vector.broadcast %cst_35 : f32 to vector<2x128xf32>
    %89 = arith.mulf %88, %87 : vector<2x128xf32>
    %90 = arith.select %5, %87, %89 : vector<2x128xi1>, vector<2x128xf32>
    %91 = math.tanh %90 : vector<2x128xf32>
    %cst_36 = arith.constant 5.000000e-01 : f32
    %92 = vector.broadcast %cst_36 : f32 to vector<2x128xf32>
    %93 = arith.mulf %92, %91 : vector<2x128xf32>
    %cst_37 = arith.constant 5.000000e-01 : f32
    %94 = vector.broadcast %cst_37 : f32 to vector<2x128xf32>
    %95 = arith.addf %93, %94 : vector<2x128xf32>
    %96 = arith.select %5, %91, %95 : vector<2x128xi1>, vector<2x128xf32>
    %97 = vector.extract_strided_slice %96 {offsets = [0, 0], sizes = [2, 32], strides = [1, 1]} : vector<2x128xf32> to vector<2x32xf32>
    %98 = vector.extract_strided_slice %96 {offsets = [0, 32], sizes = [2, 32], strides = [1, 1]} : vector<2x128xf32> to vector<2x32xf32>
    %99 = vector.extract_strided_slice %96 {offsets = [0, 64], sizes = [2, 32], strides = [1, 1]} : vector<2x128xf32> to vector<2x32xf32>
    %100 = vector.extract_strided_slice %96 {offsets = [0, 96], sizes = [2, 32], strides = [1, 1]} : vector<2x128xf32> to vector<2x32xf32>
    %101 = arith.mulf %98, %80 : vector<2x32xf32>
    %102 = arith.mulf %97, %99 : vector<2x32xf32>
    %103 = arith.addf %101, %102 : vector<2x32xf32>
    %104 = math.tanh %103 : vector<2x32xf32>
    %105 = arith.mulf %100, %104 : vector<2x32xf32>
    %106 = arith.truncf %105 : vector<2x32xf32> to vector<2x32xbf16>
    %c6_38 = arith.constant 6 : index
    %c0_39 = arith.constant 0 : index
    %107 = vector.load %arg11[%c6_38, %c0_39] : memref<16x32xbf16, #tpu.memory_space<vmem>>, vector<2x32xbf16>
    tpu.vector_store %arg11[%c6_38, %c0_39], %106 {strides = array<i32>} : memref<16x32xbf16, #tpu.memory_space<vmem>>, vector<2x32xbf16>,
    %c8 = arith.constant 8 : index
    %c0_40 = arith.constant 0 : index
    %108 = vector.load %arg13[%c8, %c0_40] : memref<16x128xf32, #tpu.memory_space<vmem>>, vector<2x128xf32>
    %cst_41 = arith.constant dense<0.000000e+00> : vector<2x128xf32>
    %109 = tpu.matmul %106, %7, %cst_41 {dimension_numbers = #tpu.dot_dimension_numbers<[1], [0], [0], [1], [0, 0, 1, 1], [], []>} : vector<2x32xbf16>, vector<32x128xbf16>, vector<2x128xf32> -> vector<2x128xf32>
    %110 = arith.addf %108, %109 : vector<2x128xf32>
    %cst_42 = arith.constant 5.000000e-01 : f32
    %111 = vector.broadcast %cst_42 : f32 to vector<2x128xf32>
    %112 = arith.mulf %111, %110 : vector<2x128xf32>
    %113 = arith.select %5, %110, %112 : vector<2x128xi1>, vector<2x128xf32>
    %114 = math.tanh %113 : vector<2x128xf32>
    %cst_43 = arith.constant 5.000000e-01 : f32
    %115 = vector.broadcast %cst_43 : f32 to vector<2x128xf32>
    %116 = arith.mulf %115, %114 : vector<2x128xf32>
    %cst_44 = arith.constant 5.000000e-01 : f32
    %117 = vector.broadcast %cst_44 : f32 to vector<2x128xf32>
    %118 = arith.addf %116, %117 : vector<2x128xf32>
    %119 = arith.select %5, %114, %118 : vector<2x128xi1>, vector<2x128xf32>
    %120 = vector.extract_strided_slice %119 {offsets = [0, 0], sizes = [2, 32], strides = [1, 1]} : vector<2x128xf32> to vector<2x32xf32>
    %121 = vector.extract_strided_slice %119 {offsets = [0, 32], sizes = [2, 32], strides = [1, 1]} : vector<2x128xf32> to vector<2x32xf32>
    %122 = vector.extract_strided_slice %119 {offsets = [0, 64], sizes = [2, 32], strides = [1, 1]} : vector<2x128xf32> to vector<2x32xf32>
    %123 = vector.extract_strided_slice %119 {offsets = [0, 96], sizes = [2, 32], strides = [1, 1]} : vector<2x128xf32> to vector<2x32xf32>
    %124 = arith.mulf %121, %103 : vector<2x32xf32>
    %125 = arith.mulf %120, %122 : vector<2x32xf32>
    %126 = arith.addf %124, %125 : vector<2x32xf32>
    %127 = math.tanh %126 : vector<2x32xf32>
    %128 = arith.mulf %123, %127 : vector<2x32xf32>
    %129 = arith.truncf %128 : vector<2x32xf32> to vector<2x32xbf16>
    %c8_45 = arith.constant 8 : index
    %c0_46 = arith.constant 0 : index
    %130 = vector.load %arg11[%c8_45, %c0_46] : memref<16x32xbf16, #tpu.memory_space<vmem>>, vector<2x32xbf16>
    tpu.vector_store %arg11[%c8_45, %c0_46], %129 {strides = array<i32>} : memref<16x32xbf16, #tpu.memory_space<vmem>>, vector<2x32xbf16>,
    %c10 = arith.constant 10 : index
    %c0_47 = arith.constant 0 : index
    %131 = vector.load %arg13[%c10, %c0_47] : memref<16x128xf32, #tpu.memory_space<vmem>>, vector<2x128xf32>
    %cst_48 = arith.constant dense<0.000000e+00> : vector<2x128xf32>
    %132 = tpu.matmul %129, %7, %cst_48 {dimension_numbers = #tpu.dot_dimension_numbers<[1], [0], [0], [1], [0, 0, 1, 1], [], []>} : vector<2x32xbf16>, vector<32x128xbf16>, vector<2x128xf32> -> vector<2x128xf32>
    %133 = arith.addf %131, %132 : vector<2x128xf32>
    %cst_49 = arith.constant 5.000000e-01 : f32
    %134 = vector.broadcast %cst_49 : f32 to vector<2x128xf32>
    %135 = arith.mulf %134, %133 : vector<2x128xf32>
    %136 = arith.select %5, %133, %135 : vector<2x128xi1>, vector<2x128xf32>
    %137 = math.tanh %136 : vector<2x128xf32>
    %cst_50 = arith.constant 5.000000e-01 : f32
    %138 = vector.broadcast %cst_50 : f32 to vector<2x128xf32>
    %139 = arith.mulf %138, %137 : vector<2x128xf32>
    %cst_51 = arith.constant 5.000000e-01 : f32
    %140 = vector.broadcast %cst_51 : f32 to vector<2x128xf32>
    %141 = arith.addf %139, %140 : vector<2x128xf32>
    %142 = arith.select %5, %137, %141 : vector<2x128xi1>, vector<2x128xf32>
    %143 = vector.extract_strided_slice %142 {offsets = [0, 0], sizes = [2, 32], strides = [1, 1]} : vector<2x128xf32> to vector<2x32xf32>
    %144 = vector.extract_strided_slice %142 {offsets = [0, 32], sizes = [2, 32], strides = [1, 1]} : vector<2x128xf32> to vector<2x32xf32>
    %145 = vector.extract_strided_slice %142 {offsets = [0, 64], sizes = [2, 32], strides = [1, 1]} : vector<2x128xf32> to vector<2x32xf32>
    %146 = vector.extract_strided_slice %142 {offsets = [0, 96], sizes = [2, 32], strides = [1, 1]} : vector<2x128xf32> to vector<2x32xf32>
    %147 = arith.mulf %144, %126 : vector<2x32xf32>
    %148 = arith.mulf %143, %145 : vector<2x32xf32>
    %149 = arith.addf %147, %148 : vector<2x32xf32>
    %150 = math.tanh %149 : vector<2x32xf32>
    %151 = arith.mulf %146, %150 : vector<2x32xf32>
    %152 = arith.truncf %151 : vector<2x32xf32> to vector<2x32xbf16>
    %c10_52 = arith.constant 10 : index
    %c0_53 = arith.constant 0 : index
    %153 = vector.load %arg11[%c10_52, %c0_53] : memref<16x32xbf16, #tpu.memory_space<vmem>>, vector<2x32xbf16>
    tpu.vector_store %arg11[%c10_52, %c0_53], %152 {strides = array<i32>} : memref<16x32xbf16, #tpu.memory_space<vmem>>, vector<2x32xbf16>,
    %c12 = arith.constant 12 : index
    %c0_54 = arith.constant 0 : index
    %154 = vector.load %arg13[%c12, %c0_54] : memref<16x128xf32, #tpu.memory_space<vmem>>, vector<2x128xf32>
    %cst_55 = arith.constant dense<0.000000e+00> : vector<2x128xf32>
    %155 = tpu.matmul %152, %7, %cst_55 {dimension_numbers = #tpu.dot_dimension_numbers<[1], [0], [0], [1], [0, 0, 1, 1], [], []>} : vector<2x32xbf16>, vector<32x128xbf16>, vector<2x128xf32> -> vector<2x128xf32>
    %156 = arith.addf %154, %155 : vector<2x128xf32>
    %cst_56 = arith.constant 5.000000e-01 : f32
    %157 = vector.broadcast %cst_56 : f32 to vector<2x128xf32>
    %158 = arith.mulf %157, %156 : vector<2x128xf32>
    %159 = arith.select %5, %156, %158 : vector<2x128xi1>, vector<2x128xf32>
    %160 = math.tanh %159 : vector<2x128xf32>
    %cst_57 = arith.constant 5.000000e-01 : f32
    %161 = vector.broadcast %cst_57 : f32 to vector<2x128xf32>
    %162 = arith.mulf %161, %160 : vector<2x128xf32>
    %cst_58 = arith.constant 5.000000e-01 : f32
    %163 = vector.broadcast %cst_58 : f32 to vector<2x128xf32>
    %164 = arith.addf %162, %163 : vector<2x128xf32>
    %165 = arith.select %5, %160, %164 : vector<2x128xi1>, vector<2x128xf32>
    %166 = vector.extract_strided_slice %165 {offsets = [0, 0], sizes = [2, 32], strides = [1, 1]} : vector<2x128xf32> to vector<2x32xf32>
    %167 = vector.extract_strided_slice %165 {offsets = [0, 32], sizes = [2, 32], strides = [1, 1]} : vector<2x128xf32> to vector<2x32xf32>
    %168 = vector.extract_strided_slice %165 {offsets = [0, 64], sizes = [2, 32], strides = [1, 1]} : vector<2x128xf32> to vector<2x32xf32>
    %169 = vector.extract_strided_slice %165 {offsets = [0, 96], sizes = [2, 32], strides = [1, 1]} : vector<2x128xf32> to vector<2x32xf32>
    %170 = arith.mulf %167, %149 : vector<2x32xf32>
    %171 = arith.mulf %166, %168 : vector<2x32xf32>
    %172 = arith.addf %170, %171 : vector<2x32xf32>
    %173 = math.tanh %172 : vector<2x32xf32>
    %174 = arith.mulf %169, %173 : vector<2x32xf32>
    %175 = arith.truncf %174 : vector<2x32xf32> to vector<2x32xbf16>
    %c12_59 = arith.constant 12 : index
    %c0_60 = arith.constant 0 : index
    %176 = vector.load %arg11[%c12_59, %c0_60] : memref<16x32xbf16, #tpu.memory_space<vmem>>, vector<2x32xbf16>
    tpu.vector_store %arg11[%c12_59, %c0_60], %175 {strides = array<i32>} : memref<16x32xbf16, #tpu.memory_space<vmem>>, vector<2x32xbf16>,
    %c14 = arith.constant 14 : index
    %c0_61 = arith.constant 0 : index
    %177 = vector.load %arg13[%c14, %c0_61] : memref<16x128xf32, #tpu.memory_space<vmem>>, vector<2x128xf32>
    %cst_62 = arith.constant dense<0.000000e+00> : vector<2x128xf32>
    %178 = tpu.matmul %175, %7, %cst_62 {dimension_numbers = #tpu.dot_dimension_numbers<[1], [0], [0], [1], [0, 0, 1, 1], [], []>} : vector<2x32xbf16>, vector<32x128xbf16>, vector<2x128xf32> -> vector<2x128xf32>
    %179 = arith.addf %177, %178 : vector<2x128xf32>
    %cst_63 = arith.constant 5.000000e-01 : f32
    %180 = vector.broadcast %cst_63 : f32 to vector<2x128xf32>
    %181 = arith.mulf %180, %179 : vector<2x128xf32>
    %182 = arith.select %5, %179, %181 : vector<2x128xi1>, vector<2x128xf32>
    %183 = math.tanh %182 : vector<2x128xf32>
    %cst_64 = arith.constant 5.000000e-01 : f32
    %184 = vector.broadcast %cst_64 : f32 to vector<2x128xf32>
    %185 = arith.mulf %184, %183 : vector<2x128xf32>
    %cst_65 = arith.constant 5.000000e-01 : f32
    %186 = vector.broadcast %cst_65 : f32 to vector<2x128xf32>
    %187 = arith.addf %185, %186 : vector<2x128xf32>
    %188 = arith.select %5, %183, %187 : vector<2x128xi1>, vector<2x128xf32>
    %189 = vector.extract_strided_slice %188 {offsets = [0, 0], sizes = [2, 32], strides = [1, 1]} : vector<2x128xf32> to vector<2x32xf32>
    %190 = vector.extract_strided_slice %188 {offsets = [0, 32], sizes = [2, 32], strides = [1, 1]} : vector<2x128xf32> to vector<2x32xf32>
    %191 = vector.extract_strided_slice %188 {offsets = [0, 64], sizes = [2, 32], strides = [1, 1]} : vector<2x128xf32> to vector<2x32xf32>
    %192 = vector.extract_strided_slice %188 {offsets = [0, 96], sizes = [2, 32], strides = [1, 1]} : vector<2x128xf32> to vector<2x32xf32>
    %193 = arith.mulf %190, %172 : vector<2x32xf32>
    %194 = arith.mulf %189, %191 : vector<2x32xf32>
    %195 = arith.addf %193, %194 : vector<2x32xf32>
    %196 = math.tanh %195 : vector<2x32xf32>
    %197 = arith.mulf %192, %196 : vector<2x32xf32>
    %198 = arith.truncf %197 : vector<2x32xf32> to vector<2x32xbf16>
    %c14_66 = arith.constant 14 : index
    %c0_67 = arith.constant 0 : index
    %199 = vector.load %arg11[%c14_66, %c0_67] : memref<16x32xbf16, #tpu.memory_space<vmem>>, vector<2x32xbf16>
    tpu.vector_store %arg11[%c14_66, %c0_67], %198 {strides = array<i32>} : memref<16x32xbf16, #tpu.memory_space<vmem>>, vector<2x32xbf16>,
    %c0_68 = arith.constant 0 : index
    %c0_69 = arith.constant 0 : index
    %200 = vector.load %arg12[%c0_68, %c0_69] : memref<4x32xbf16, #tpu.memory_space<vmem>>, vector<2x32xbf16>
    tpu.vector_store %arg12[%c0_68, %c0_69], %198 {strides = array<i32>} : memref<4x32xbf16, #tpu.memory_space<vmem>>, vector<2x32xbf16>,
    %c0_70 = arith.constant 0 : index
    %c0_71 = arith.constant 0 : index
    %201 = vector.load %arg5[%c0_70, %c0_71] : memref<32x128xbf16, #tpu.memory_space<vmem>>, vector<32x128xbf16>
    %c0_72 = arith.constant 0 : index
    %c0_73 = arith.constant 0 : index
    %202 = vector.load %arg6[%c0_72, %c0_73] : memref<32x128xbf16, #tpu.memory_space<vmem>>, vector<32x128xbf16>
    %c0_74 = arith.constant 0 : index
    %c0_75 = arith.constant 0 : index
    %203 = vector.load %arg7[%c0_74, %c0_75] : memref<1x128xf32, #tpu.memory_space<vmem>>, vector<1x128xf32>
    %c0_76 = arith.constant 0 : index
    %c0_77 = arith.constant 0 : index
    %204 = vector.load %arg11[%c0_76, %c0_77] : memref<16x32xbf16, #tpu.memory_space<vmem>>, vector<16x32xbf16>
    %cst_78 = arith.constant dense<0.000000e+00> : vector<16x128xf32>
    %205 = tpu.matmul %204, %201, %cst_78 {dimension_numbers = #tpu.dot_dimension_numbers<[1], [0], [0], [1], [0, 0, 1, 1], [], []>} : vector<16x32xbf16>, vector<32x128xbf16>, vector<16x128xf32> -> vector<16x128xf32>
    %206 = vector.broadcast %203 : vector<1x128xf32> to vector<16x128xf32>
    %207 = arith.addf %205, %206 : vector<16x128xf32>
    %c0_79 = arith.constant 0 : index
    %c0_80 = arith.constant 0 : index
    %208 = vector.load %arg13[%c0_79, %c0_80] : memref<16x128xf32, #tpu.memory_space<vmem>>, vector<16x128xf32>
    tpu.vector_store %arg13[%c0_79, %c0_80], %207 {strides = array<i32>} : memref<16x128xf32, #tpu.memory_space<vmem>>, vector<16x128xf32>,
    %cst_81 = arith.constant 0.000000e+00 : bf16
    %209 = vector.broadcast %cst_81 : bf16 to vector<2x32xbf16>
    %cst_82 = arith.constant 0.000000e+00 : f32
    %210 = vector.broadcast %cst_82 : f32 to vector<2x32xf32>
    %c0_83 = arith.constant 0 : index
    %c0_84 = arith.constant 0 : index
    %211 = vector.load %arg13[%c0_83, %c0_84] : memref<16x128xf32, #tpu.memory_space<vmem>>, vector<2x128xf32>
    %cst_85 = arith.constant dense<0.000000e+00> : vector<2x128xf32>
    %212 = tpu.matmul %209, %202, %cst_85 {dimension_numbers = #tpu.dot_dimension_numbers<[1], [0], [0], [1], [0, 0, 1, 1], [], []>} : vector<2x32xbf16>, vector<32x128xbf16>, vector<2x128xf32> -> vector<2x128xf32>
    %213 = arith.addf %211, %212 : vector<2x128xf32>
    %cst_86 = arith.constant 5.000000e-01 : f32
    %214 = vector.broadcast %cst_86 : f32 to vector<2x128xf32>
    %215 = arith.mulf %214, %213 : vector<2x128xf32>
    %216 = arith.select %5, %213, %215 : vector<2x128xi1>, vector<2x128xf32>
    %217 = math.tanh %216 : vector<2x128xf32>
    %cst_87 = arith.constant 5.000000e-01 : f32
    %218 = vector.broadcast %cst_87 : f32 to vector<2x128xf32>
    %219 = arith.mulf %218, %217 : vector<2x128xf32>
    %cst_88 = arith.constant 5.000000e-01 : f32
    %220 = vector.broadcast %cst_88 : f32 to vector<2x128xf32>
    %221 = arith.addf %219, %220 : vector<2x128xf32>
    %222 = arith.select %5, %217, %221 : vector<2x128xi1>, vector<2x128xf32>
    %223 = vector.extract_strided_slice %222 {offsets = [0, 0], sizes = [2, 32], strides = [1, 1]} : vector<2x128xf32> to vector<2x32xf32>
    %224 = vector.extract_strided_slice %222 {offsets = [0, 32], sizes = [2, 32], strides = [1, 1]} : vector<2x128xf32> to vector<2x32xf32>
    %225 = vector.extract_strided_slice %222 {offsets = [0, 64], sizes = [2, 32], strides = [1, 1]} : vector<2x128xf32> to vector<2x32xf32>
    %226 = vector.extract_strided_slice %222 {offsets = [0, 96], sizes = [2, 32], strides = [1, 1]} : vector<2x128xf32> to vector<2x32xf32>
    %227 = arith.mulf %224, %210 : vector<2x32xf32>
    %228 = arith.mulf %223, %225 : vector<2x32xf32>
    %229 = arith.addf %227, %228 : vector<2x32xf32>
    %230 = math.tanh %229 : vector<2x32xf32>
    %231 = arith.mulf %226, %230 : vector<2x32xf32>
    %232 = arith.truncf %231 : vector<2x32xf32> to vector<2x32xbf16>
    %c2_89 = arith.constant 2 : index
    %c0_90 = arith.constant 0 : index
    %233 = vector.load %arg13[%c2_89, %c0_90] : memref<16x128xf32, #tpu.memory_space<vmem>>, vector<2x128xf32>
    %cst_91 = arith.constant dense<0.000000e+00> : vector<2x128xf32>
    %234 = tpu.matmul %232, %202, %cst_91 {dimension_numbers = #tpu.dot_dimension_numbers<[1], [0], [0], [1], [0, 0, 1, 1], [], []>} : vector<2x32xbf16>, vector<32x128xbf16>, vector<2x128xf32> -> vector<2x128xf32>
    %235 = arith.addf %233, %234 : vector<2x128xf32>
    %cst_92 = arith.constant 5.000000e-01 : f32
    %236 = vector.broadcast %cst_92 : f32 to vector<2x128xf32>
    %237 = arith.mulf %236, %235 : vector<2x128xf32>
    %238 = arith.select %5, %235, %237 : vector<2x128xi1>, vector<2x128xf32>
    %239 = math.tanh %238 : vector<2x128xf32>
    %cst_93 = arith.constant 5.000000e-01 : f32
    %240 = vector.broadcast %cst_93 : f32 to vector<2x128xf32>
    %241 = arith.mulf %240, %239 : vector<2x128xf32>
    %cst_94 = arith.constant 5.000000e-01 : f32
    %242 = vector.broadcast %cst_94 : f32 to vector<2x128xf32>
    %243 = arith.addf %241, %242 : vector<2x128xf32>
    %244 = arith.select %5, %239, %243 : vector<2x128xi1>, vector<2x128xf32>
    %245 = vector.extract_strided_slice %244 {offsets = [0, 0], sizes = [2, 32], strides = [1, 1]} : vector<2x128xf32> to vector<2x32xf32>
    %246 = vector.extract_strided_slice %244 {offsets = [0, 32], sizes = [2, 32], strides = [1, 1]} : vector<2x128xf32> to vector<2x32xf32>
    %247 = vector.extract_strided_slice %244 {offsets = [0, 64], sizes = [2, 32], strides = [1, 1]} : vector<2x128xf32> to vector<2x32xf32>
    %248 = vector.extract_strided_slice %244 {offsets = [0, 96], sizes = [2, 32], strides = [1, 1]} : vector<2x128xf32> to vector<2x32xf32>
    %249 = arith.mulf %246, %229 : vector<2x32xf32>
    %250 = arith.mulf %245, %247 : vector<2x32xf32>
    %251 = arith.addf %249, %250 : vector<2x32xf32>
    %252 = math.tanh %251 : vector<2x32xf32>
    %253 = arith.mulf %248, %252 : vector<2x32xf32>
    %254 = arith.truncf %253 : vector<2x32xf32> to vector<2x32xbf16>
    %c4_95 = arith.constant 4 : index
    %c0_96 = arith.constant 0 : index
    %255 = vector.load %arg13[%c4_95, %c0_96] : memref<16x128xf32, #tpu.memory_space<vmem>>, vector<2x128xf32>
    %cst_97 = arith.constant dense<0.000000e+00> : vector<2x128xf32>
    %256 = tpu.matmul %254, %202, %cst_97 {dimension_numbers = #tpu.dot_dimension_numbers<[1], [0], [0], [1], [0, 0, 1, 1], [], []>} : vector<2x32xbf16>, vector<32x128xbf16>, vector<2x128xf32> -> vector<2x128xf32>
    %257 = arith.addf %255, %256 : vector<2x128xf32>
    %cst_98 = arith.constant 5.000000e-01 : f32
    %258 = vector.broadcast %cst_98 : f32 to vector<2x128xf32>
    %259 = arith.mulf %258, %257 : vector<2x128xf32>
    %260 = arith.select %5, %257, %259 : vector<2x128xi1>, vector<2x128xf32>
    %261 = math.tanh %260 : vector<2x128xf32>
    %cst_99 = arith.constant 5.000000e-01 : f32
    %262 = vector.broadcast %cst_99 : f32 to vector<2x128xf32>
    %263 = arith.mulf %262, %261 : vector<2x128xf32>
    %cst_100 = arith.constant 5.000000e-01 : f32
    %264 = vector.broadcast %cst_100 : f32 to vector<2x128xf32>
    %265 = arith.addf %263, %264 : vector<2x128xf32>
    %266 = arith.select %5, %261, %265 : vector<2x128xi1>, vector<2x128xf32>
    %267 = vector.extract_strided_slice %266 {offsets = [0, 0], sizes = [2, 32], strides = [1, 1]} : vector<2x128xf32> to vector<2x32xf32>
    %268 = vector.extract_strided_slice %266 {offsets = [0, 32], sizes = [2, 32], strides = [1, 1]} : vector<2x128xf32> to vector<2x32xf32>
    %269 = vector.extract_strided_slice %266 {offsets = [0, 64], sizes = [2, 32], strides = [1, 1]} : vector<2x128xf32> to vector<2x32xf32>
    %270 = vector.extract_strided_slice %266 {offsets = [0, 96], sizes = [2, 32], strides = [1, 1]} : vector<2x128xf32> to vector<2x32xf32>
    %271 = arith.mulf %268, %251 : vector<2x32xf32>
    %272 = arith.mulf %267, %269 : vector<2x32xf32>
    %273 = arith.addf %271, %272 : vector<2x32xf32>
    %274 = math.tanh %273 : vector<2x32xf32>
    %275 = arith.mulf %270, %274 : vector<2x32xf32>
    %276 = arith.truncf %275 : vector<2x32xf32> to vector<2x32xbf16>
    %c6_101 = arith.constant 6 : index
    %c0_102 = arith.constant 0 : index
    %277 = vector.load %arg13[%c6_101, %c0_102] : memref<16x128xf32, #tpu.memory_space<vmem>>, vector<2x128xf32>
    %cst_103 = arith.constant dense<0.000000e+00> : vector<2x128xf32>
    %278 = tpu.matmul %276, %202, %cst_103 {dimension_numbers = #tpu.dot_dimension_numbers<[1], [0], [0], [1], [0, 0, 1, 1], [], []>} : vector<2x32xbf16>, vector<32x128xbf16>, vector<2x128xf32> -> vector<2x128xf32>
    %279 = arith.addf %277, %278 : vector<2x128xf32>
    %cst_104 = arith.constant 5.000000e-01 : f32
    %280 = vector.broadcast %cst_104 : f32 to vector<2x128xf32>
    %281 = arith.mulf %280, %279 : vector<2x128xf32>
    %282 = arith.select %5, %279, %281 : vector<2x128xi1>, vector<2x128xf32>
    %283 = math.tanh %282 : vector<2x128xf32>
    %cst_105 = arith.constant 5.000000e-01 : f32
    %284 = vector.broadcast %cst_105 : f32 to vector<2x128xf32>
    %285 = arith.mulf %284, %283 : vector<2x128xf32>
    %cst_106 = arith.constant 5.000000e-01 : f32
    %286 = vector.broadcast %cst_106 : f32 to vector<2x128xf32>
    %287 = arith.addf %285, %286 : vector<2x128xf32>
    %288 = arith.select %5, %283, %287 : vector<2x128xi1>, vector<2x128xf32>
    %289 = vector.extract_strided_slice %288 {offsets = [0, 0], sizes = [2, 32], strides = [1, 1]} : vector<2x128xf32> to vector<2x32xf32>
    %290 = vector.extract_strided_slice %288 {offsets = [0, 32], sizes = [2, 32], strides = [1, 1]} : vector<2x128xf32> to vector<2x32xf32>
    %291 = vector.extract_strided_slice %288 {offsets = [0, 64], sizes = [2, 32], strides = [1, 1]} : vector<2x128xf32> to vector<2x32xf32>
    %292 = vector.extract_strided_slice %288 {offsets = [0, 96], sizes = [2, 32], strides = [1, 1]} : vector<2x128xf32> to vector<2x32xf32>
    %293 = arith.mulf %290, %273 : vector<2x32xf32>
    %294 = arith.mulf %289, %291 : vector<2x32xf32>
    %295 = arith.addf %293, %294 : vector<2x32xf32>
    %296 = math.tanh %295 : vector<2x32xf32>
    %297 = arith.mulf %292, %296 : vector<2x32xf32>
    %298 = arith.truncf %297 : vector<2x32xf32> to vector<2x32xbf16>
    %c8_107 = arith.constant 8 : index
    %c0_108 = arith.constant 0 : index
    %299 = vector.load %arg13[%c8_107, %c0_108] : memref<16x128xf32, #tpu.memory_space<vmem>>, vector<2x128xf32>
    %cst_109 = arith.constant dense<0.000000e+00> : vector<2x128xf32>
    %300 = tpu.matmul %298, %202, %cst_109 {dimension_numbers = #tpu.dot_dimension_numbers<[1], [0], [0], [1], [0, 0, 1, 1], [], []>} : vector<2x32xbf16>, vector<32x128xbf16>, vector<2x128xf32> -> vector<2x128xf32>
    %301 = arith.addf %299, %300 : vector<2x128xf32>
    %cst_110 = arith.constant 5.000000e-01 : f32
    %302 = vector.broadcast %cst_110 : f32 to vector<2x128xf32>
    %303 = arith.mulf %302, %301 : vector<2x128xf32>
    %304 = arith.select %5, %301, %303 : vector<2x128xi1>, vector<2x128xf32>
    %305 = math.tanh %304 : vector<2x128xf32>
    %cst_111 = arith.constant 5.000000e-01 : f32
    %306 = vector.broadcast %cst_111 : f32 to vector<2x128xf32>
    %307 = arith.mulf %306, %305 : vector<2x128xf32>
    %cst_112 = arith.constant 5.000000e-01 : f32
    %308 = vector.broadcast %cst_112 : f32 to vector<2x128xf32>
    %309 = arith.addf %307, %308 : vector<2x128xf32>
    %310 = arith.select %5, %305, %309 : vector<2x128xi1>, vector<2x128xf32>
    %311 = vector.extract_strided_slice %310 {offsets = [0, 0], sizes = [2, 32], strides = [1, 1]} : vector<2x128xf32> to vector<2x32xf32>
    %312 = vector.extract_strided_slice %310 {offsets = [0, 32], sizes = [2, 32], strides = [1, 1]} : vector<2x128xf32> to vector<2x32xf32>
    %313 = vector.extract_strided_slice %310 {offsets = [0, 64], sizes = [2, 32], strides = [1, 1]} : vector<2x128xf32> to vector<2x32xf32>
    %314 = vector.extract_strided_slice %310 {offsets = [0, 96], sizes = [2, 32], strides = [1, 1]} : vector<2x128xf32> to vector<2x32xf32>
    %315 = arith.mulf %312, %295 : vector<2x32xf32>
    %316 = arith.mulf %311, %313 : vector<2x32xf32>
    %317 = arith.addf %315, %316 : vector<2x32xf32>
    %318 = math.tanh %317 : vector<2x32xf32>
    %319 = arith.mulf %314, %318 : vector<2x32xf32>
    %320 = arith.truncf %319 : vector<2x32xf32> to vector<2x32xbf16>
    %c10_113 = arith.constant 10 : index
    %c0_114 = arith.constant 0 : index
    %321 = vector.load %arg13[%c10_113, %c0_114] : memref<16x128xf32, #tpu.memory_space<vmem>>, vector<2x128xf32>
    %cst_115 = arith.constant dense<0.000000e+00> : vector<2x128xf32>
    %322 = tpu.matmul %320, %202, %cst_115 {dimension_numbers = #tpu.dot_dimension_numbers<[1], [0], [0], [1], [0, 0, 1, 1], [], []>} : vector<2x32xbf16>, vector<32x128xbf16>, vector<2x128xf32> -> vector<2x128xf32>
    %323 = arith.addf %321, %322 : vector<2x128xf32>
    %cst_116 = arith.constant 5.000000e-01 : f32
    %324 = vector.broadcast %cst_116 : f32 to vector<2x128xf32>
    %325 = arith.mulf %324, %323 : vector<2x128xf32>
    %326 = arith.select %5, %323, %325 : vector<2x128xi1>, vector<2x128xf32>
    %327 = math.tanh %326 : vector<2x128xf32>
    %cst_117 = arith.constant 5.000000e-01 : f32
    %328 = vector.broadcast %cst_117 : f32 to vector<2x128xf32>
    %329 = arith.mulf %328, %327 : vector<2x128xf32>
    %cst_118 = arith.constant 5.000000e-01 : f32
    %330 = vector.broadcast %cst_118 : f32 to vector<2x128xf32>
    %331 = arith.addf %329, %330 : vector<2x128xf32>
    %332 = arith.select %5, %327, %331 : vector<2x128xi1>, vector<2x128xf32>
    %333 = vector.extract_strided_slice %332 {offsets = [0, 0], sizes = [2, 32], strides = [1, 1]} : vector<2x128xf32> to vector<2x32xf32>
    %334 = vector.extract_strided_slice %332 {offsets = [0, 32], sizes = [2, 32], strides = [1, 1]} : vector<2x128xf32> to vector<2x32xf32>
    %335 = vector.extract_strided_slice %332 {offsets = [0, 64], sizes = [2, 32], strides = [1, 1]} : vector<2x128xf32> to vector<2x32xf32>
    %336 = vector.extract_strided_slice %332 {offsets = [0, 96], sizes = [2, 32], strides = [1, 1]} : vector<2x128xf32> to vector<2x32xf32>
    %337 = arith.mulf %334, %317 : vector<2x32xf32>
    %338 = arith.mulf %333, %335 : vector<2x32xf32>
    %339 = arith.addf %337, %338 : vector<2x32xf32>
    %340 = math.tanh %339 : vector<2x32xf32>
    %341 = arith.mulf %336, %340 : vector<2x32xf32>
    %342 = arith.truncf %341 : vector<2x32xf32> to vector<2x32xbf16>
    %c12_119 = arith.constant 12 : index
    %c0_120 = arith.constant 0 : index
    %343 = vector.load %arg13[%c12_119, %c0_120] : memref<16x128xf32, #tpu.memory_space<vmem>>, vector<2x128xf32>
    %cst_121 = arith.constant dense<0.000000e+00> : vector<2x128xf32>
    %344 = tpu.matmul %342, %202, %cst_121 {dimension_numbers = #tpu.dot_dimension_numbers<[1], [0], [0], [1], [0, 0, 1, 1], [], []>} : vector<2x32xbf16>, vector<32x128xbf16>, vector<2x128xf32> -> vector<2x128xf32>
    %345 = arith.addf %343, %344 : vector<2x128xf32>
    %cst_122 = arith.constant 5.000000e-01 : f32
    %346 = vector.broadcast %cst_122 : f32 to vector<2x128xf32>
    %347 = arith.mulf %346, %345 : vector<2x128xf32>
    %348 = arith.select %5, %345, %347 : vector<2x128xi1>, vector<2x128xf32>
    %349 = math.tanh %348 : vector<2x128xf32>
    %cst_123 = arith.constant 5.000000e-01 : f32
    %350 = vector.broadcast %cst_123 : f32 to vector<2x128xf32>
    %351 = arith.mulf %350, %349 : vector<2x128xf32>
    %cst_124 = arith.constant 5.000000e-01 : f32
    %352 = vector.broadcast %cst_124 : f32 to vector<2x128xf32>
    %353 = arith.addf %351, %352 : vector<2x128xf32>
    %354 = arith.select %5, %349, %353 : vector<2x128xi1>, vector<2x128xf32>
    %355 = vector.extract_strided_slice %354 {offsets = [0, 0], sizes = [2, 32], strides = [1, 1]} : vector<2x128xf32> to vector<2x32xf32>
    %356 = vector.extract_strided_slice %354 {offsets = [0, 32], sizes = [2, 32], strides = [1, 1]} : vector<2x128xf32> to vector<2x32xf32>
    %357 = vector.extract_strided_slice %354 {offsets = [0, 64], sizes = [2, 32], strides = [1, 1]} : vector<2x128xf32> to vector<2x32xf32>
    %358 = vector.extract_strided_slice %354 {offsets = [0, 96], sizes = [2, 32], strides = [1, 1]} : vector<2x128xf32> to vector<2x32xf32>
    %359 = arith.mulf %356, %339 : vector<2x32xf32>
    %360 = arith.mulf %355, %357 : vector<2x32xf32>
    %361 = arith.addf %359, %360 : vector<2x32xf32>
    %362 = math.tanh %361 : vector<2x32xf32>
    %363 = arith.mulf %358, %362 : vector<2x32xf32>
    %364 = arith.truncf %363 : vector<2x32xf32> to vector<2x32xbf16>
    %c14_125 = arith.constant 14 : index
    %c0_126 = arith.constant 0 : index
    %365 = vector.load %arg13[%c14_125, %c0_126] : memref<16x128xf32, #tpu.memory_space<vmem>>, vector<2x128xf32>
    %cst_127 = arith.constant dense<0.000000e+00> : vector<2x128xf32>
    %366 = tpu.matmul %364, %202, %cst_127 {dimension_numbers = #tpu.dot_dimension_numbers<[1], [0], [0], [1], [0, 0, 1, 1], [], []>} : vector<2x32xbf16>, vector<32x128xbf16>, vector<2x128xf32> -> vector<2x128xf32>
    %367 = arith.addf %365, %366 : vector<2x128xf32>
    %cst_128 = arith.constant 5.000000e-01 : f32
    %368 = vector.broadcast %cst_128 : f32 to vector<2x128xf32>
    %369 = arith.mulf %368, %367 : vector<2x128xf32>
    %370 = arith.select %5, %367, %369 : vector<2x128xi1>, vector<2x128xf32>
    %371 = math.tanh %370 : vector<2x128xf32>
    %cst_129 = arith.constant 5.000000e-01 : f32
    %372 = vector.broadcast %cst_129 : f32 to vector<2x128xf32>
    %373 = arith.mulf %372, %371 : vector<2x128xf32>
    %cst_130 = arith.constant 5.000000e-01 : f32
    %374 = vector.broadcast %cst_130 : f32 to vector<2x128xf32>
    %375 = arith.addf %373, %374 : vector<2x128xf32>
    %376 = arith.select %5, %371, %375 : vector<2x128xi1>, vector<2x128xf32>
    %377 = vector.extract_strided_slice %376 {offsets = [0, 0], sizes = [2, 32], strides = [1, 1]} : vector<2x128xf32> to vector<2x32xf32>
    %378 = vector.extract_strided_slice %376 {offsets = [0, 32], sizes = [2, 32], strides = [1, 1]} : vector<2x128xf32> to vector<2x32xf32>
    %379 = vector.extract_strided_slice %376 {offsets = [0, 64], sizes = [2, 32], strides = [1, 1]} : vector<2x128xf32> to vector<2x32xf32>
    %380 = vector.extract_strided_slice %376 {offsets = [0, 96], sizes = [2, 32], strides = [1, 1]} : vector<2x128xf32> to vector<2x32xf32>
    %381 = arith.mulf %378, %361 : vector<2x32xf32>
    %382 = arith.mulf %377, %379 : vector<2x32xf32>
    %383 = arith.addf %381, %382 : vector<2x32xf32>
    %384 = math.tanh %383 : vector<2x32xf32>
    %385 = arith.mulf %380, %384 : vector<2x32xf32>
    %386 = arith.truncf %385 : vector<2x32xf32> to vector<2x32xbf16>
    %c2_131 = arith.constant 2 : index
    %c0_132 = arith.constant 0 : index
    %387 = vector.load %arg12[%c2_131, %c0_132] : memref<4x32xbf16, #tpu.memory_space<vmem>>, vector<2x32xbf16>
    tpu.vector_store %arg12[%c2_131, %c0_132], %386 {strides = array<i32>} : memref<4x32xbf16, #tpu.memory_space<vmem>>, vector<2x32xbf16>,
    %c0_133 = arith.constant 0 : index
    %c0_134 = arith.constant 0 : index
    %388 = vector.load %arg12[%c0_133, %c0_134] : memref<4x32xbf16, #tpu.memory_space<vmem>>, vector<4x32xbf16>
    %c0_135 = arith.constant 0 : index
    %c0_136 = arith.constant 0 : index
    %389 = vector.load %arg8[%c0_135, %c0_136] : memref<32x128xbf16, #tpu.memory_space<vmem>>, vector<32x128xbf16>
    %cst_137 = arith.constant dense<0.000000e+00> : vector<4x128xf32>
    %390 = tpu.matmul %388, %389, %cst_137 {dimension_numbers = #tpu.dot_dimension_numbers<[1], [0], [0], [1], [0, 0, 1, 1], [], []>} : vector<4x32xbf16>, vector<32x128xbf16>, vector<4x128xf32> -> vector<4x128xf32>
    %c0_138 = arith.constant 0 : index
    %c0_139 = arith.constant 0 : index
    %391 = vector.load %arg9[%c0_138, %c0_139] : memref<1x128xf32, #tpu.memory_space<vmem>>, vector<1x128xf32>
    %392 = vector.broadcast %391 : vector<1x128xf32> to vector<4x128xf32>
    %393 = arith.addf %390, %392 : vector<4x128xf32>
    %c0_140 = arith.constant 0 : index
    %c0_141 = arith.constant 0 : index
    %394 = vector.load %arg10[%c0_140, %c0_141] : memref<4x128xf32, #tpu.memory_space<vmem>>, vector<4x128xf32>
    tpu.vector_store %arg10[%c0_140, %c0_141], %393 {strides = array<i32>} : memref<4x128xf32, #tpu.memory_space<vmem>>, vector<4x128xf32>,
    return
  }
  func.func @transform_0(%arg0: i32) -> (i32, i32) {
    %c0_i32 = arith.constant 0 : i32
    %c0_i32_0 = arith.constant 0 : i32
    %c0_i32_1 = arith.constant 0 : i32
    return %c0_i32, %c0_i32_0 : i32, i32
  }
  func.func @transform_1(%arg0: i32) -> (i32, i32) {
    %c0_i32 = arith.constant 0 : i32
    %c0_i32_0 = arith.constant 0 : i32
    %c0_i32_1 = arith.constant 0 : i32
    return %c0_i32, %c0_i32_0 : i32, i32
  }
  func.func @transform_2(%arg0: i32) -> (i32, i32) {
    %c0_i32 = arith.constant 0 : i32
    %c0_i32_0 = arith.constant 0 : i32
    %c0_i32_1 = arith.constant 0 : i32
    return %c0_i32, %c0_i32_0 : i32, i32
  }
  func.func @transform_3(%arg0: i32) -> (i32, i32) {
    %c0_i32 = arith.constant 0 : i32
    %c0_i32_0 = arith.constant 0 : i32
    %c0_i32_1 = arith.constant 0 : i32
    return %c0_i32, %c0_i32_0 : i32, i32
  }
  func.func @transform_4(%arg0: i32) -> (i32, i32) {
    %c0_i32 = arith.constant 0 : i32
    %c0_i32_0 = arith.constant 0 : i32
    %c0_i32_1 = arith.constant 0 : i32
    return %c0_i32, %c0_i32_0 : i32, i32
  }
  func.func @transform_5(%arg0: i32) -> (i32, i32) {
    %c0_i32 = arith.constant 0 : i32
    %c0_i32_0 = arith.constant 0 : i32
    %c0_i32_1 = arith.constant 0 : i32
    return %c0_i32, %c0_i32_0 : i32, i32
  }
  func.func @transform_6(%arg0: i32) -> (i32, i32) {
    %c0_i32 = arith.constant 0 : i32
    %c0_i32_0 = arith.constant 0 : i32
    %c0_i32_1 = arith.constant 0 : i32
    return %c0_i32, %c0_i32_0 : i32, i32
  }
  func.func @transform_7(%arg0: i32) -> (i32, i32) {
    %c0_i32 = arith.constant 0 : i32
    %c0_i32_0 = arith.constant 0 : i32
    %c0_i32_1 = arith.constant 0 : i32
    return %c0_i32, %c0_i32_0 : i32, i32
  }
  func.func @transform_8(%arg0: i32) -> (i32, i32) {
    %c0_i32 = arith.constant 0 : i32
    %c0_i32_0 = arith.constant 0 : i32
    %c0_i32_1 = arith.constant 0 : i32
    return %c0_i32, %c0_i32_0 : i32, i32
  }
  func.func @transform_9(%arg0: i32) -> (i32, i32) {
    %c0_i32 = arith.constant 0 : i32
    %c0_i32_0 = arith.constant 0 : i32
    %c0_i32_1 = arith.constant 0 : i32
    return %c0_i32, %c0_i32_0 : i32, i32
  }
}

</mosaic_0001>

<llo_original>
// kernel: lstm_model_forward.1
$region0: #{lstm_model_forward.1}
  #allocation0 [shape = 'u32[]', space=smem, size = 0x4, offset = 0x4, fixed_abs, tag = 'smem constant byte address 0x4 - core index']
  #allocation1 [shape = 'u32[72,128]{1,0:T(1,128)}', space=vmem, size = 0x9000, scoped, tag = 'internal scratch']
  #allocation2 [shape = 'bf16[16,32]{1,0:T(8,128)(2,1)}', space=vmem, size = 0x1000, scoped, tag = 'scratch operand']
  #allocation3 [shape = 'bf16[4,32]{1,0:T(4,128)(2,1)}', space=vmem, size = 0x400, scoped, tag = 'scratch operand']
  #allocation4 [shape = 'f32[16,128]{1,0:T(8,128)}', space=vmem, size = 0x2000, scoped, tag = 'scratch operand']
  %s0 = inlined_call_operand.vmem [shape: bf16[16,4], index: 0, kind: input, shape index: {}]
  %s1 = inlined_call_operand.vmem [shape: bf16[4,128], index: 1, kind: input, shape index: {}]
  %s2 = inlined_call_operand.vmem [shape: bf16[32,128], index: 2, kind: input, shape index: {}]
  %s3 = inlined_call_operand.vmem [shape: f32[1,128], index: 3, kind: input, shape index: {}]
  %s4 = inlined_call_operand.vmem [shape: bf16[32,128], index: 4, kind: input, shape index: {}]
  %s5 = inlined_call_operand.vmem [shape: bf16[32,128], index: 5, kind: input, shape index: {}]
  %s6 = inlined_call_operand.vmem [shape: f32[1,128], index: 6, kind: input, shape index: {}]
  %s7 = inlined_call_operand.vmem [shape: bf16[32,128], index: 7, kind: input, shape index: {}]
  %s8 = inlined_call_operand.vmem [shape: f32[1,128], index: 8, kind: input, shape index: {}]
  %s9 = inlined_call_operand.hbm [shape: f32[4,128], index: 9, kind: output, shape index: {}]
  %s10 = sld [smem:[#allocation0]]
  $region46: #{lstm_model_forward.1} parent=0
    _
  %s12 = ssub.s32 1, %s10
  %s13 = scalar_select 0, %s12, %s10
  $region1: #{lstm_model_forward.1} parent=0
    #allocation5 [shape = 'u8[2048]{0}', space=vmem, size = 0x800, scoped, tag = 'output window, operand 0, single buffered']
    #allocation6 [shape = 's32[1]{0}', space=sflag, size = 0x4, scoped, tag = 'scoped memory for lstm_model_forward.1']
    %14 = vsyncpa [#allocation6], 0
    // Predicated region
    $region2: #{lstm_model_forward.1} parent=1 // pred_check
      _
    $region3: #{lstm_model_forward.1} parent=1 // pred_check_branch
      %16 = sbr.rel (0) target = $region5
    $region4: #{lstm_model_forward.1} parent=1 // pred_region
      _
    $region5: #{lstm_model_forward.1} parent=1 // pred_fallthru
      _
    // Predicated region
    $region6: #{lstm_model_forward.1} parent=1 // pred_check
      _
    $region7: #{lstm_model_forward.1} parent=1 // pred_check_branch
      %18 = sbr.rel (0) target = $region9
    $region8: #{lstm_model_forward.1} parent=1 // pred_region
      _
    $region9: #{lstm_model_forward.1} parent=1 // pred_fallthru
      _
    // Predicated region
    $region10: #{lstm_model_forward.1} parent=1 // pred_check
      _
    $region11: #{lstm_model_forward.1} parent=1 // pred_check_branch
      %20 = sbr.rel (0) target = $region13
    $region12: #{lstm_model_forward.1} parent=1 // pred_region
      _
    $region13: #{lstm_model_forward.1} parent=1 // pred_fallthru
      _
    // Predicated region
    $region14: #{lstm_model_forward.1} parent=1 // pred_check
      _
    $region15: #{lstm_model_forward.1} parent=1 // pred_check_branch
      %22 = sbr.rel (0) target = $region17
    $region16: #{lstm_model_forward.1} parent=1 // pred_region
      _
    $region17: #{lstm_model_forward.1} parent=1 // pred_fallthru
      _
    // Predicated region
    $region18: #{lstm_model_forward.1} parent=1 // pred_check
      _
    $region19: #{lstm_model_forward.1} parent=1 // pred_check_branch
      %24 = sbr.rel (0) target = $region21
    $region20: #{lstm_model_forward.1} parent=1 // pred_region
      _
    $region21: #{lstm_model_forward.1} parent=1 // pred_fallthru
      _
    // Predicated region
    $region22: #{lstm_model_forward.1} parent=1 // pred_check
      _
    $region23: #{lstm_model_forward.1} parent=1 // pred_check_branch
      %26 = sbr.rel (0) target = $region25
    $region24: #{lstm_model_forward.1} parent=1 // pred_region
      _
    $region25: #{lstm_model_forward.1} parent=1 // pred_fallthru
      _
    // Predicated region
    $region26: #{lstm_model_forward.1} parent=1 // pred_check
      _
    $region27: #{lstm_model_forward.1} parent=1 // pred_check_branch
      %28 = sbr.rel (0) target = $region29
    $region28: #{lstm_model_forward.1} parent=1 // pred_region
      _
    $region29: #{lstm_model_forward.1} parent=1 // pred_fallthru
      _
    // Predicated region
    $region30: #{lstm_model_forward.1} parent=1 // pred_check
      _
    $region31: #{lstm_model_forward.1} parent=1 // pred_check_branch
      %30 = sbr.rel (0) target = $region33
    $region32: #{lstm_model_forward.1} parent=1 // pred_region
      _
    $region33: #{lstm_model_forward.1} parent=1 // pred_fallthru
      _
    // Predicated region
    $region34: #{lstm_model_forward.1} parent=1 // pred_check
      _
    $region35: #{lstm_model_forward.1} parent=1 // pred_check_branch
      %32 = sbr.rel (0) target = $region37
    $region36: #{lstm_model_forward.1} parent=1 // pred_region
      _
    $region37: #{lstm_model_forward.1} parent=1 // pred_fallthru
      _
    %v34 = vlaneseq
    %v35 = vand.u32 %v34, 127
    %vm36 = vcmp.ge.s32.totalorder %v35, 64
    %vm37 = vcmp.lt.s32.totalorder %v35, 96
    %vm38 = vmand %vm36, %vm37
    %v39 = vld [vmem:[%s1] sm:$0x3]
    %v40 = vld [vmem:[%s2] sm:$0xf]
    %v41 = vld [vmem:[%s2 + $0x4] sm:$0xf]
    %v42 = vld [vmem:[%s2 + $0x8] sm:$0xf]
    %v43 = vld [vmem:[%s2 + $0xc] sm:$0xf]
    %v44 = vld [vmem:[%s3] sm:$0x1]
    %v45 = vld [vmem:[%s0] sm:$0xf]
    %v46 = vld [vmem:[%s0 + $0x4] sm:$0xf]
    %v48 = vperm.slane %v44, 0
    %v52 = vunpack.c.l.b16 %v45
    %v53 = vunpack.c.l.b16 %v46
    %v54 = vpack.c.b16 %v53, %v52
    %vm55 = vcmask 31744
    %v57 = vsel %vm55, %v54, 0
    %vm59 = vcmask 1041408
    %v61 = vsel %vm59, %v39, 0
    %63 = vmatpush.bf16.msra.mxu0 0
    %64 = vmatpush.bf16.msra.mxu0 0
    %65 = vmatpush.bf16.msra.mxu0 0
    %66 = vmatpush.bf16.msra.mxu0 0
    %67 = vmatpush.bf16.msra.mxu0 0
    %68 = vmatpush.bf16.msra.mxu0 0
    %69 = vmatpush.bf16.msra.mxu0 0
    %70 = vmatpush.bf16.msra.mxu0 %v61
    %71 = vmatmul.bf16.gmra.mxu0 %v57
    %v72 = vpop.f32.mrf.mxu0
    %v73 = vadd.f32 %v48, %v72
    %v74 = vpop.f32.mrf.mxu0
    %v75 = vadd.f32 %v48, %v74
    %76 = vdwg.mxu0
    %77 = vst [vmem:[#allocation4] sm:$0xff] %v73
    %78 = vst [vmem:[#allocation4 + $0x8] sm:$0xff] %v75
    %v79 = vld [vmem:[#allocation4] sm:$0x3]
    %v84 = vunpack.c.l.b16 %v40
    %v85 = vunpack.c.l.b16 %v41
    %v86 = vunpack.c.l.b16 %v42
    %v87 = vunpack.c.l.b16 %v43
    %v88 = vpack.c.b16 %v85, %v84
    %v89 = vpack.c.b16 %v87, %v86
    %vm92 = vcmask 261120
    %v94 = vsel %vm92, 0, 0
    %96 = vmatpush.bf16.msra.mxu0 0
    %97 = vmatpush.bf16.msra.mxu0 0
    %98 = vmatpush.bf16.msra.mxu0 0
    %99 = vmatpush.bf16.msra.mxu0 0
    %100 = vmatpush.bf16.msra.mxu0 0
    %101 = vmatpush.bf16.msra.mxu0 0
    %102 = vmatpush.bf16.msra.mxu0 %v89
    %103 = vmatpush.bf16.msra.mxu0 %v88
    %104 = vmatmul.bf16.gmra.mxu0 %v94
    %v105 = vpop.f32.mrf.mxu0
    %v106 = vadd.f32 0.0, %v105
    %v107 = vpop.f32.mrf.mxu0
    %108 = vdwg.mxu0
    %v109 = vadd.f32 %v79, %v106
    %v110 = vmul.f32 %v109, 0.5
    %v111 = vsel %vm38, %v109, %v110
    %v112 = vtanh.pop %v111
    %v113 = vmul.f32 %v112, 0.5
    %v114 = vadd.f32 %v113, 0.5
    %v115 = vsel %vm38, %v112, %v114
    %v116 = vmul.f32 %v115, 0.0
    %118 = vrot.lane.b32.xlu0 %v115, 64
    %v119 = vpop.permute.xlu0 %118
    %v121 = vmul.f32 %v115, %v119
    %123 = vrot.lane.b32.xlu0 %v121, 32
    %v124 = vpop.permute.xlu0 %123
    %v126 = vadd.f32 %v116, %v124
    %v127 = vtanh.pop %v126
    %129 = vrot.lane.b32.xlu0 %v127, 64
    %v130 = vpop.permute.xlu0 %129
    %v132 = vmul.f32 %v115, %v130
    %v133 = vpack.c.bf16 %v132, %v132
    %135 = vrot.lane.b32.xlu0 %v133, 32
    %v136 = vpop.permute.xlu0 %135
    %vm138 = vcmask 253952
    %139 = vst.msk [vmem:[#allocation2] sm:$0x1] %vm138, %v136
    %v140 = vld [vmem:[#allocation4 + $0x2] sm:$0x3]
    %v141 = vunpack.c.l.b16 %v133
    %v142 = vpack.c.b16 %v141, %v141
    %143 = vrot.lane.b32.xlu0 %v142, 32
    %v144 = vpop.permute.xlu0 %143
    %v146 = vsel %vm92, %v144, 0
    %148 = vmatpush.bf16.msra.mxu0 0
    %149 = vmatpush.bf16.msra.mxu0 0
    %150 = vmatpush.bf16.msra.mxu0 0
    %151 = vmatpush.bf16.msra.mxu0 0
    %152 = vmatpush.bf16.msra.mxu0 0
    %153 = vmatpush.bf16.msra.mxu0 0
    %154 = vmatpush.bf16.msra.mxu0 %v89
    %155 = vmatpush.bf16.msra.mxu0 %v88
    %156 = vmatmul.bf16.gmra.mxu0 %v146
    %v157 = vpop.f32.mrf.mxu0
    %v158 = vadd.f32 0.0, %v157
    %v159 = vpop.f32.mrf.mxu0
    %160 = vdwg.mxu0
    %v161 = vadd.f32 %v140, %v158
    %v162 = vmul.f32 %v161, 0.5
    %v163 = vsel %vm38, %v161, %v162
    %v164 = vtanh.pop %v163
    %v165 = vmul.f32 %v164, 0.5
    %v166 = vadd.f32 %v165, 0.5
    %v167 = vsel %vm38, %v164, %v166
    %v168 = vmul.f32 %v167, %v126
    %170 = vrot.lane.b32.xlu0 %v167, 64
    %v171 = vpop.permute.xlu0 %170
    %v173 = vmul.f32 %v167, %v171
    %175 = vrot.lane.b32.xlu0 %v173, 32
    %v176 = vpop.permute.xlu0 %175
    %v178 = vadd.f32 %v168, %v176
    %v179 = vtanh.pop %v178
    %181 = vrot.lane.b32.xlu0 %v179, 64
    %v182 = vpop.permute.xlu0 %181
    %v184 = vmul.f32 %v167, %v182
    %v185 = vpack.c.bf16 %v184, %v184
    %v187 = vrot.slane %v185, 7
    %188 = vrot.lane.b32.xlu0 %v187, 32
    %v189 = vpop.permute.xlu0 %188
    %vm191 = vcmask 254977
    %192 = vst.msk [vmem:[#allocation2] sm:$0x2] %vm191, %v189
    %v193 = vld [vmem:[#allocation4 + $0x4] sm:$0x3]
    %v194 = vunpack.c.l.b16 %v185
    %v195 = vpack.c.b16 %v194, %v194
    %196 = vrot.lane.b32.xlu0 %v195, 32
    %v197 = vpop.permute.xlu0 %196
    %v199 = vsel %vm92, %v197, 0
    %201 = vmatpush.bf16.msra.mxu0 0
    %202 = vmatpush.bf16.msra.mxu0 0
    %203 = vmatpush.bf16.msra.mxu0 0
    %204 = vmatpush.bf16.msra.mxu0 0
    %205 = vmatpush.bf16.msra.mxu0 0
    %206 = vmatpush.bf16.msra.mxu0 0
    %207 = vmatpush.bf16.msra.mxu0 %v89
    %208 = vmatpush.bf16.msra.mxu0 %v88
    %209 = vmatmul.bf16.gmra.mxu0 %v199
    %v210 = vpop.f32.mrf.mxu0
    %v211 = vadd.f32 0.0, %v210
    %v212 = vpop.f32.mrf.mxu0
    %213 = vdwg.mxu0
    %v214 = vadd.f32 %v193, %v211
    %v215 = vmul.f32 %v214, 0.5
    %v216 = vsel %vm38, %v214, %v215
    %v217 = vtanh.pop %v216
    %v218 = vmul.f32 %v217, 0.5
    %v219 = vadd.f32 %v218, 0.5
    %v220 = vsel %vm38, %v217, %v219
    %v221 = vmul.f32 %v220, %v178
    %223 = vrot.lane.b32.xlu0 %v220, 64
    %v224 = vpop.permute.xlu0 %223
    %v226 = vmul.f32 %v220, %v224
    %228 = vrot.lane.b32.xlu0 %v226, 32
    %v229 = vpop.permute.xlu0 %228
    %v231 = vadd.f32 %v221, %v229
    %v232 = vtanh.pop %v231
    %234 = vrot.lane.b32.xlu0 %v232, 64
    %v235 = vpop.permute.xlu0 %234
    %v237 = vmul.f32 %v220, %v235
    %v238 = vpack.c.bf16 %v237, %v237
    %v240 = vrot.slane %v238, 6
    %241 = vrot.lane.b32.xlu0 %v240, 32
    %v242 = vpop.permute.xlu0 %241
    %vm244 = vcmask 256002
    %245 = vst.msk [vmem:[#allocation2] sm:$0x4] %vm244, %v242
    %v246 = vld [vmem:[#allocation4 + $0x6] sm:$0x3]
    %v247 = vunpack.c.l.b16 %v238
    %v248 = vpack.c.b16 %v247, %v247
    %249 = vrot.lane.b32.xlu0 %v248, 32
    %v250 = vpop.permute.xlu0 %249
    %v252 = vsel %vm92, %v250, 0
    %254 = vmatpush.bf16.msra.mxu0 0
    %255 = vmatpush.bf16.msra.mxu0 0
    %256 = vmatpush.bf16.msra.mxu0 0
    %257 = vmatpush.bf16.msra.mxu0 0
    %258 = vmatpush.bf16.msra.mxu0 0
    %259 = vmatpush.bf16.msra.mxu0 0
    %260 = vmatpush.bf16.msra.mxu0 %v89
    %261 = vmatpush.bf16.msra.mxu0 %v88
    %262 = vmatmul.bf16.gmra.mxu0 %v252
    %v263 = vpop.f32.mrf.mxu0
    %v264 = vadd.f32 0.0, %v263
    %v265 = vpop.f32.mrf.mxu0
    %266 = vdwg.mxu0
    %v267 = vadd.f32 %v246, %v264
    %v268 = vmul.f32 %v267, 0.5
    %v269 = vsel %vm38, %v267, %v268
    %v270 = vtanh.pop %v269
    %v271 = vmul.f32 %v270, 0.5
    %v272 = vadd.f32 %v271, 0.5
    %v273 = vsel %vm38, %v270, %v272
    %v274 = vmul.f32 %v273, %v231
    %276 = vrot.lane.b32.xlu0 %v273, 64
    %v277 = vpop.permute.xlu0 %276
    %v279 = vmul.f32 %v273, %v277
    %281 = vrot.lane.b32.xlu0 %v279, 32
    %v282 = vpop.permute.xlu0 %281
    %v284 = vadd.f32 %v274, %v282
    %v285 = vtanh.pop %v284
    %287 = vrot.lane.b32.xlu0 %v285, 64
    %v288 = vpop.permute.xlu0 %287
    %v290 = vmul.f32 %v273, %v288
    %v291 = vpack.c.bf16 %v290, %v290
    %v293 = vrot.slane %v291, 5
    %294 = vrot.lane.b32.xlu0 %v293, 32
    %v295 = vpop.permute.xlu0 %294
    %vm297 = vcmask 257027
    %298 = vst.msk [vmem:[#allocation2] sm:$0x8] %vm297, %v295
    %v299 = vld [vmem:[#allocation4 + $0x8] sm:$0x3]
    %v300 = vunpack.c.l.b16 %v291
    %v301 = vpack.c.b16 %v300, %v300
    %302 = vrot.lane.b32.xlu0 %v301, 32
    %v303 = vpop.permute.xlu0 %302
    %v305 = vsel %vm92, %v303, 0
    %307 = vmatpush.bf16.msra.mxu0 0
    %308 = vmatpush.bf16.msra.mxu0 0
    %309 = vmatpush.bf16.msra.mxu0 0
    %310 = vmatpush.bf16.msra.mxu0 0
    %311 = vmatpush.bf16.msra.mxu0 0
    %312 = vmatpush.bf16.msra.mxu0 0
    %313 = vmatpush.bf16.msra.mxu0 %v89
    %314 = vmatpush.bf16.msra.mxu0 %v88
    %315 = vmatmul.bf16.gmra.mxu0 %v305
    %v316 = vpop.f32.mrf.mxu0
    %v317 = vadd.f32 0.0, %v316
    %v318 = vpop.f32.mrf.mxu0
    %319 = vdwg.mxu0
    %v320 = vadd.f32 %v299, %v317
    %v321 = vmul.f32 %v320, 0.5
    %v322 = vsel %vm38, %v320, %v321
    %v323 = vtanh.pop %v322
    %v324 = vmul.f32 %v323, 0.5
    %v325 = vadd.f32 %v324, 0.5
    %v326 = vsel %vm38, %v323, %v325
    %v327 = vmul.f32 %v326, %v284
    %329 = vrot.lane.b32.xlu0 %v326, 64
    %v330 = vpop.permute.xlu0 %329
    %v332 = vmul.f32 %v326, %v330
    %334 = vrot.lane.b32.xlu0 %v332, 32
    %v335 = vpop.permute.xlu0 %334
    %v337 = vadd.f32 %v327, %v335
    %v338 = vtanh.pop %v337
    %340 = vrot.lane.b32.xlu0 %v338, 64
    %v341 = vpop.permute.xlu0 %340
    %v343 = vmul.f32 %v326, %v341
    %v344 = vpack.c.bf16 %v343, %v343
    %346 = vrot.lane.b32.xlu0 %v344, 32
    %v347 = vpop.permute.xlu0 %346
    %349 = vst.msk [vmem:[#allocation2 + $0x4] sm:$0x1] %vm138, %v347
    %v350 = vld [vmem:[#allocation4 + $0xa] sm:$0x3]
    %v351 = vunpack.c.l.b16 %v344
    %v352 = vpack.c.b16 %v351, %v351
    %353 = vrot.lane.b32.xlu0 %v352, 32
    %v354 = vpop.permute.xlu0 %353
    %v356 = vsel %vm92, %v354, 0
    %358 = vmatpush.bf16.msra.mxu0 0
    %359 = vmatpush.bf16.msra.mxu0 0
    %360 = vmatpush.bf16.msra.mxu0 0
    %361 = vmatpush.bf16.msra.mxu0 0
    %362 = vmatpush.bf16.msra.mxu0 0
    %363 = vmatpush.bf16.msra.mxu0 0
    %364 = vmatpush.bf16.msra.mxu0 %v89
    %365 = vmatpush.bf16.msra.mxu0 %v88
    %366 = vmatmul.bf16.gmra.mxu0 %v356
    %v367 = vpop.f32.mrf.mxu0
    %v368 = vadd.f32 0.0, %v367
    %v369 = vpop.f32.mrf.mxu0
    %370 = vdwg.mxu0
    %v371 = vadd.f32 %v350, %v368
    %v372 = vmul.f32 %v371, 0.5
    %v373 = vsel %vm38, %v371, %v372
    %v374 = vtanh.pop %v373
    %v375 = vmul.f32 %v374, 0.5
    %v376 = vadd.f32 %v375, 0.5
    %v377 = vsel %vm38, %v374, %v376
    %v378 = vmul.f32 %v377, %v337
    %380 = vrot.lane.b32.xlu0 %v377, 64
    %v381 = vpop.permute.xlu0 %380
    %v383 = vmul.f32 %v377, %v381
    %385 = vrot.lane.b32.xlu0 %v383, 32
    %v386 = vpop.permute.xlu0 %385
    %v388 = vadd.f32 %v378, %v386
    %v389 = vtanh.pop %v388
    %391 = vrot.lane.b32.xlu0 %v389, 64
    %v392 = vpop.permute.xlu0 %391
    %v394 = vmul.f32 %v377, %v392
    %v395 = vpack.c.bf16 %v394, %v394
    %v397 = vrot.slane %v395, 7
    %398 = vrot.lane.b32.xlu0 %v397, 32
    %v399 = vpop.permute.xlu0 %398
    %401 = vst.msk [vmem:[#allocation2 + $0x4] sm:$0x2] %vm191, %v399
    %v402 = vld [vmem:[#allocation4 + $0xc] sm:$0x3]
    %v403 = vunpack.c.l.b16 %v395
    %v404 = vpack.c.b16 %v403, %v403
    %405 = vrot.lane.b32.xlu0 %v404, 32
    %v406 = vpop.permute.xlu0 %405
    %v408 = vsel %vm92, %v406, 0
    %410 = vmatpush.bf16.msra.mxu0 0
    %411 = vmatpush.bf16.msra.mxu0 0
    %412 = vmatpush.bf16.msra.mxu0 0
    %413 = vmatpush.bf16.msra.mxu0 0
    %414 = vmatpush.bf16.msra.mxu0 0
    %415 = vmatpush.bf16.msra.mxu0 0
    %416 = vmatpush.bf16.msra.mxu0 %v89
    %417 = vmatpush.bf16.msra.mxu0 %v88
    %418 = vmatmul.bf16.gmra.mxu0 %v408
    %v419 = vpop.f32.mrf.mxu0
    %v420 = vadd.f32 0.0, %v419
    %v421 = vpop.f32.mrf.mxu0
    %422 = vdwg.mxu0
    %v423 = vadd.f32 %v402, %v420
    %v424 = vmul.f32 %v423, 0.5
    %v425 = vsel %vm38, %v423, %v424
    %v426 = vtanh.pop %v425
    %v427 = vmul.f32 %v426, 0.5
    %v428 = vadd.f32 %v427, 0.5
    %v429 = vsel %vm38, %v426, %v428
    %v430 = vmul.f32 %v429, %v388
    %432 = vrot.lane.b32.xlu0 %v429, 64
    %v433 = vpop.permute.xlu0 %432
    %v435 = vmul.f32 %v429, %v433
    %437 = vrot.lane.b32.xlu0 %v435, 32
    %v438 = vpop.permute.xlu0 %437
    %v440 = vadd.f32 %v430, %v438
    %v441 = vtanh.pop %v440
    %443 = vrot.lane.b32.xlu0 %v441, 64
    %v444 = vpop.permute.xlu0 %443
    %v446 = vmul.f32 %v429, %v444
    %v447 = vpack.c.bf16 %v446, %v446
    %v449 = vrot.slane %v447, 6
    %450 = vrot.lane.b32.xlu0 %v449, 32
    %v451 = vpop.permute.xlu0 %450
    %453 = vst.msk [vmem:[#allocation2 + $0x4] sm:$0x4] %vm244, %v451
    %v454 = vld [vmem:[#allocation4 + $0xe] sm:$0x3]
    %v455 = vunpack.c.l.b16 %v447
    %v456 = vpack.c.b16 %v455, %v455
    %457 = vrot.lane.b32.xlu0 %v456, 32
    %v458 = vpop.permute.xlu0 %457
    %v460 = vsel %vm92, %v458, 0
    %462 = vmatpush.bf16.msra.mxu0 0
    %463 = vmatpush.bf16.msra.mxu0 0
    %464 = vmatpush.bf16.msra.mxu0 0
    %465 = vmatpush.bf16.msra.mxu0 0
    %466 = vmatpush.bf16.msra.mxu0 0
    %467 = vmatpush.bf16.msra.mxu0 0
    %468 = vmatpush.bf16.msra.mxu0 %v89
    %469 = vmatpush.bf16.msra.mxu0 %v88
    %470 = vmatmul.bf16.gmra.mxu0 %v460
    %v471 = vpop.f32.mrf.mxu0
    %v472 = vadd.f32 0.0, %v471
    %v473 = vpop.f32.mrf.mxu0
    %474 = vdwg.mxu0
    %v475 = vadd.f32 %v454, %v472
    %v476 = vmul.f32 %v475, 0.5
    %v477 = vsel %vm38, %v475, %v476
    %v478 = vtanh.pop %v477
    %v479 = vmul.f32 %v478, 0.5
    %v480 = vadd.f32 %v479, 0.5
    %v481 = vsel %vm38, %v478, %v480
    %v482 = vmul.f32 %v481, %v440
    %484 = vrot.lane.b32.xlu0 %v481, 64
    %v485 = vpop.permute.xlu0 %484
    %v487 = vmul.f32 %v481, %v485
    %489 = vrot.lane.b32.xlu0 %v487, 32
    %v490 = vpop.permute.xlu0 %489
    %v492 = vadd.f32 %v482, %v490
    %v493 = vtanh.pop %v492
    %495 = vrot.lane.b32.xlu0 %v493, 64
    %v496 = vpop.permute.xlu0 %495
    %v498 = vmul.f32 %v481, %v496
    %v499 = vpack.c.bf16 %v498, %v498
    %v501 = vrot.slane %v499, 5
    %502 = vrot.lane.b32.xlu0 %v501, 32
    %v503 = vpop.permute.xlu0 %502
    %505 = vst.msk [vmem:[#allocation2 + $0x4] sm:$0x8] %vm297, %v503
    %v506 = vrot.slane %v499, 2
    %v509 = vsel %vm59, %v499, %v506
    %511 = vrot.lane.b32.xlu0 %v509, 32
    %v512 = vpop.permute.xlu0 %511
    %514 = vst.msk [vmem:[#allocation3] sm:$0x1] %vm138, %v512
    %v515 = vld [vmem:[%s4] sm:$0xf]
    %v516 = vld [vmem:[%s4 + $0x4] sm:$0xf]
    %v517 = vld [vmem:[%s4 + $0x8] sm:$0xf]
    %v518 = vld [vmem:[%s4 + $0xc] sm:$0xf]
    %v519 = vld [vmem:[%s5] sm:$0xf]
    %v520 = vld [vmem:[%s5 + $0x4] sm:$0xf]
    %v521 = vld [vmem:[%s5 + $0x8] sm:$0xf]
    %v522 = vld [vmem:[%s5 + $0xc] sm:$0xf]
    %v523 = vld [vmem:[%s6] sm:$0x1]
    %v524 = vld [vmem:[#allocation2] sm:$0xf]
    %v525 = vld [vmem:[#allocation2 + $0x4] sm:$0xf]
    %v527 = vperm.slane %v523, 0
    %v531 = vunpack.c.l.b16 %v524
    %v532 = vunpack.c.l.b16 %v525
    %v533 = vpack.c.b16 %v532, %v531
    %v538 = vunpack.c.l.b16 %v515
    %v539 = vunpack.c.l.b16 %v516
    %v540 = vunpack.c.l.b16 %v517
    %v541 = vunpack.c.l.b16 %v518
    %v542 = vpack.c.b16 %v539, %v538
    %v543 = vpack.c.b16 %v541, %v540
    %v547 = vsel %vm92, %v533, 0
    %549 = vmatpush.bf16.msra.mxu0 0
    %550 = vmatpush.bf16.msra.mxu0 0
    %551 = vmatpush.bf16.msra.mxu0 0
    %552 = vmatpush.bf16.msra.mxu0 0
    %553 = vmatpush.bf16.msra.mxu0 0
    %554 = vmatpush.bf16.msra.mxu0 0
    %555 = vmatpush.bf16.msra.mxu0 %v543
    %556 = vmatpush.bf16.msra.mxu0 %v542
    %557 = vmatmul.bf16.gmra.mxu0 %v547
    %v558 = vpop.f32.mrf.mxu0
    %v559 = vadd.f32 %v527, %v558
    %v560 = vpop.f32.mrf.mxu0
    %v561 = vadd.f32 %v527, %v560
    %562 = vdwg.mxu0
    %563 = vst [vmem:[#allocation4] sm:$0xff] %v559
    %564 = vst [vmem:[#allocation4 + $0x8] sm:$0xff] %v561
    %v565 = vld [vmem:[#allocation4] sm:$0x3]
    %v570 = vunpack.c.l.b16 %v519
    %v571 = vunpack.c.l.b16 %v520
    %v572 = vunpack.c.l.b16 %v521
    %v573 = vunpack.c.l.b16 %v522
    %v574 = vpack.c.b16 %v571, %v570
    %v575 = vpack.c.b16 %v573, %v572
    %578 = vmatpush.bf16.msra.mxu0 0
    %579 = vmatpush.bf16.msra.mxu0 0
    %580 = vmatpush.bf16.msra.mxu0 0
    %581 = vmatpush.bf16.msra.mxu0 0
    %582 = vmatpush.bf16.msra.mxu0 0
    %583 = vmatpush.bf16.msra.mxu0 0
    %584 = vmatpush.bf16.msra.mxu0 %v575
    %585 = vmatpush.bf16.msra.mxu0 %v574
    %586 = vmatmul.bf16.gmra.mxu0 %v94
    %v587 = vpop.f32.mrf.mxu0
    %v588 = vadd.f32 0.0, %v587
    %v589 = vpop.f32.mrf.mxu0
    %590 = vdwg.mxu0
    %v591 = vadd.f32 %v565, %v588
    %v592 = vmul.f32 %v591, 0.5
    %v593 = vsel %vm38, %v591, %v592
    %v594 = vtanh.pop %v593
    %v595 = vmul.f32 %v594, 0.5
    %v596 = vadd.f32 %v595, 0.5
    %v597 = vsel %vm38, %v594, %v596
    %v598 = vmul.f32 %v597, 0.0
    %600 = vrot.lane.b32.xlu0 %v597, 64
    %v601 = vpop.permute.xlu0 %600
    %v603 = vmul.f32 %v597, %v601
    %605 = vrot.lane.b32.xlu0 %v603, 32
    %v606 = vpop.permute.xlu0 %605
    %v608 = vadd.f32 %v598, %v606
    %v609 = vtanh.pop %v608
    %611 = vrot.lane.b32.xlu0 %v609, 64
    %v612 = vpop.permute.xlu0 %611
    %v614 = vmul.f32 %v597, %v612
    %v615 = vpack.c.bf16 %v614, %v614
    %v616 = vld [vmem:[#allocation4 + $0x2] sm:$0x3]
    %618 = vrot.lane.b32.xlu0 %v615, 32
    %v619 = vpop.permute.xlu0 %618
    %v621 = vsel %vm92, %v619, 0
    %623 = vmatpush.bf16.msra.mxu0 0
    %624 = vmatpush.bf16.msra.mxu0 0
    %625 = vmatpush.bf16.msra.mxu0 0
    %626 = vmatpush.bf16.msra.mxu0 0
    %627 = vmatpush.bf16.msra.mxu0 0
    %628 = vmatpush.bf16.msra.mxu0 0
    %629 = vmatpush.bf16.msra.mxu0 %v575
    %630 = vmatpush.bf16.msra.mxu0 %v574
    %631 = vmatmul.bf16.gmra.mxu0 %v621
    %v632 = vpop.f32.mrf.mxu0
    %v633 = vadd.f32 0.0, %v632
    %v634 = vpop.f32.mrf.mxu0
    %635 = vdwg.mxu0
    %v636 = vadd.f32 %v616, %v633
    %v637 = vmul.f32 %v636, 0.5
    %v638 = vsel %vm38, %v636, %v637
    %v639 = vtanh.pop %v638
    %v640 = vmul.f32 %v639, 0.5
    %v641 = vadd.f32 %v640, 0.5
    %v642 = vsel %vm38, %v639, %v641
    %v643 = vmul.f32 %v642, %v608
    %645 = vrot.lane.b32.xlu0 %v642, 64
    %v646 = vpop.permute.xlu0 %645
    %v648 = vmul.f32 %v642, %v646
    %650 = vrot.lane.b32.xlu0 %v648, 32
    %v651 = vpop.permute.xlu0 %650
    %v653 = vadd.f32 %v643, %v651
    %v654 = vtanh.pop %v653
    %656 = vrot.lane.b32.xlu0 %v654, 64
    %v657 = vpop.permute.xlu0 %656
    %v659 = vmul.f32 %v642, %v657
    %v660 = vpack.c.bf16 %v659, %v659
    %v661 = vld [vmem:[#allocation4 + $0x4] sm:$0x3]
    %663 = vrot.lane.b32.xlu0 %v660, 32
    %v664 = vpop.permute.xlu0 %663
    %v666 = vsel %vm92, %v664, 0
    %668 = vmatpush.bf16.msra.mxu0 0
    %669 = vmatpush.bf16.msra.mxu0 0
    %670 = vmatpush.bf16.msra.mxu0 0
    %671 = vmatpush.bf16.msra.mxu0 0
    %672 = vmatpush.bf16.msra.mxu0 0
    %673 = vmatpush.bf16.msra.mxu0 0
    %674 = vmatpush.bf16.msra.mxu0 %v575
    %675 = vmatpush.bf16.msra.mxu0 %v574
    %676 = vmatmul.bf16.gmra.mxu0 %v666
    %v677 = vpop.f32.mrf.mxu0
    %v678 = vadd.f32 0.0, %v677
    %v679 = vpop.f32.mrf.mxu0
    %680 = vdwg.mxu0
    %v681 = vadd.f32 %v661, %v678
    %v682 = vmul.f32 %v681, 0.5
    %v683 = vsel %vm38, %v681, %v682
    %v684 = vtanh.pop %v683
    %v685 = vmul.f32 %v684, 0.5
    %v686 = vadd.f32 %v685, 0.5
    %v687 = vsel %vm38, %v684, %v686
    %v688 = vmul.f32 %v687, %v653
    %690 = vrot.lane.b32.xlu0 %v687, 64
    %v691 = vpop.permute.xlu0 %690
    %v693 = vmul.f32 %v687, %v691
    %695 = vrot.lane.b32.xlu0 %v693, 32
    %v696 = vpop.permute.xlu0 %695
    %v698 = vadd.f32 %v688, %v696
    %v699 = vtanh.pop %v698
    %701 = vrot.lane.b32.xlu0 %v699, 64
    %v702 = vpop.permute.xlu0 %701
    %v704 = vmul.f32 %v687, %v702
    %v705 = vpack.c.bf16 %v704, %v704
    %v706 = vld [vmem:[#allocation4 + $0x6] sm:$0x3]
    %708 = vrot.lane.b32.xlu0 %v705, 32
    %v709 = vpop.permute.xlu0 %708
    %v711 = vsel %vm92, %v709, 0
    %713 = vmatpush.bf16.msra.mxu0 0
    %714 = vmatpush.bf16.msra.mxu0 0
    %715 = vmatpush.bf16.msra.mxu0 0
    %716 = vmatpush.bf16.msra.mxu0 0
    %717 = vmatpush.bf16.msra.mxu0 0
    %718 = vmatpush.bf16.msra.mxu0 0
    %719 = vmatpush.bf16.msra.mxu0 %v575
    %720 = vmatpush.bf16.msra.mxu0 %v574
    %721 = vmatmul.bf16.gmra.mxu0 %v711
    %v722 = vpop.f32.mrf.mxu0
    %v723 = vadd.f32 0.0, %v722
    %v724 = vpop.f32.mrf.mxu0
    %725 = vdwg.mxu0
    %v726 = vadd.f32 %v706, %v723
    %v727 = vmul.f32 %v726, 0.5
    %v728 = vsel %vm38, %v726, %v727
    %v729 = vtanh.pop %v728
    %v730 = vmul.f32 %v729, 0.5
    %v731 = vadd.f32 %v730, 0.5
    %v732 = vsel %vm38, %v729, %v731
    %v733 = vmul.f32 %v732, %v698
    %735 = vrot.lane.b32.xlu0 %v732, 64
    %v736 = vpop.permute.xlu0 %735
    %v738 = vmul.f32 %v732, %v736
    %740 = vrot.lane.b32.xlu0 %v738, 32
    %v741 = vpop.permute.xlu0 %740
    %v743 = vadd.f32 %v733, %v741
    %v744 = vtanh.pop %v743
    %746 = vrot.lane.b32.xlu0 %v744, 64
    %v747 = vpop.permute.xlu0 %746
    %v749 = vmul.f32 %v732, %v747
    %v750 = vpack.c.bf16 %v749, %v749
    %v751 = vld [vmem:[#allocation4 + $0x8] sm:$0x3]
    %753 = vrot.lane.b32.xlu0 %v750, 32
    %v754 = vpop.permute.xlu0 %753
    %v756 = vsel %vm92, %v754, 0
    %758 = vmatpush.bf16.msra.mxu0 0
    %759 = vmatpush.bf16.msra.mxu0 0
    %760 = vmatpush.bf16.msra.mxu0 0
    %761 = vmatpush.bf16.msra.mxu0 0
    %762 = vmatpush.bf16.msra.mxu0 0
    %763 = vmatpush.bf16.msra.mxu0 0
    %764 = vmatpush.bf16.msra.mxu0 %v575
    %765 = vmatpush.bf16.msra.mxu0 %v574
    %766 = vmatmul.bf16.gmra.mxu0 %v756
    %v767 = vpop.f32.mrf.mxu0
    %v768 = vadd.f32 0.0, %v767
    %v769 = vpop.f32.mrf.mxu0
    %770 = vdwg.mxu0
    %v771 = vadd.f32 %v751, %v768
    %v772 = vmul.f32 %v771, 0.5
    %v773 = vsel %vm38, %v771, %v772
    %v774 = vtanh.pop %v773
    %v775 = vmul.f32 %v774, 0.5
    %v776 = vadd.f32 %v775, 0.5
    %v777 = vsel %vm38, %v774, %v776
    %v778 = vmul.f32 %v777, %v743
    %780 = vrot.lane.b32.xlu0 %v777, 64
    %v781 = vpop.permute.xlu0 %780
    %v783 = vmul.f32 %v777, %v781
    %785 = vrot.lane.b32.xlu0 %v783, 32
    %v786 = vpop.permute.xlu0 %785
    %v788 = vadd.f32 %v778, %v786
    %v789 = vtanh.pop %v788
    %791 = vrot.lane.b32.xlu0 %v789, 64
    %v792 = vpop.permute.xlu0 %791
    %v794 = vmul.f32 %v777, %v792
    %v795 = vpack.c.bf16 %v794, %v794
    %v796 = vld [vmem:[#allocation4 + $0xa] sm:$0x3]
    %798 = vrot.lane.b32.xlu0 %v795, 32
    %v799 = vpop.permute.xlu0 %798
    %v801 = vsel %vm92, %v799, 0
    %803 = vmatpush.bf16.msra.mxu0 0
    %804 = vmatpush.bf16.msra.mxu0 0
    %805 = vmatpush.bf16.msra.mxu0 0
    %806 = vmatpush.bf16.msra.mxu0 0
    %807 = vmatpush.bf16.msra.mxu0 0
    %808 = vmatpush.bf16.msra.mxu0 0
    %809 = vmatpush.bf16.msra.mxu0 %v575
    %810 = vmatpush.bf16.msra.mxu0 %v574
    %811 = vmatmul.bf16.gmra.mxu0 %v801
    %v812 = vpop.f32.mrf.mxu0
    %v813 = vadd.f32 0.0, %v812
    %v814 = vpop.f32.mrf.mxu0
    %815 = vdwg.mxu0
    %v816 = vadd.f32 %v796, %v813
    %v817 = vmul.f32 %v816, 0.5
    %v818 = vsel %vm38, %v816, %v817
    %v819 = vtanh.pop %v818
    %v820 = vmul.f32 %v819, 0.5
    %v821 = vadd.f32 %v820, 0.5
    %v822 = vsel %vm38, %v819, %v821
    %v823 = vmul.f32 %v822, %v788
    %825 = vrot.lane.b32.xlu0 %v822, 64
    %v826 = vpop.permute.xlu0 %825
    %v828 = vmul.f32 %v822, %v826
    %830 = vrot.lane.b32.xlu0 %v828, 32
    %v831 = vpop.permute.xlu0 %830
    %v833 = vadd.f32 %v823, %v831
    %v834 = vtanh.pop %v833
    %836 = vrot.lane.b32.xlu0 %v834, 64
    %v837 = vpop.permute.xlu0 %836
    %v839 = vmul.f32 %v822, %v837
    %v840 = vpack.c.bf16 %v839, %v839
    %v841 = vld [vmem:[#allocation4 + $0xc] sm:$0x3]
    %843 = vrot.lane.b32.xlu0 %v840, 32
    %v844 = vpop.permute.xlu0 %843
    %v846 = vsel %vm92, %v844, 0
    %848 = vmatpush.bf16.msra.mxu0 0
    %849 = vmatpush.bf16.msra.mxu0 0
    %850 = vmatpush.bf16.msra.mxu0 0
    %851 = vmatpush.bf16.msra.mxu0 0
    %852 = vmatpush.bf16.msra.mxu0 0
    %853 = vmatpush.bf16.msra.mxu0 0
    %854 = vmatpush.bf16.msra.mxu0 %v575
    %855 = vmatpush.bf16.msra.mxu0 %v574
    %856 = vmatmul.bf16.gmra.mxu0 %v846
    %v857 = vpop.f32.mrf.mxu0
    %v858 = vadd.f32 0.0, %v857
    %v859 = vpop.f32.mrf.mxu0
    %860 = vdwg.mxu0
    %v861 = vadd.f32 %v841, %v858
    %v862 = vmul.f32 %v861, 0.5
    %v863 = vsel %vm38, %v861, %v862
    %v864 = vtanh.pop %v863
    %v865 = vmul.f32 %v864, 0.5
    %v866 = vadd.f32 %v865, 0.5
    %v867 = vsel %vm38, %v864, %v866
    %v868 = vmul.f32 %v867, %v833
    %870 = vrot.lane.b32.xlu0 %v867, 64
    %v871 = vpop.permute.xlu0 %870
    %v873 = vmul.f32 %v867, %v871
    %875 = vrot.lane.b32.xlu0 %v873, 32
    %v876 = vpop.permute.xlu0 %875
    %v878 = vadd.f32 %v868, %v876
    %v879 = vtanh.pop %v878
    %881 = vrot.lane.b32.xlu0 %v879, 64
    %v882 = vpop.permute.xlu0 %881
    %v884 = vmul.f32 %v867, %v882
    %v885 = vpack.c.bf16 %v884, %v884
    %v886 = vld [vmem:[#allocation4 + $0xe] sm:$0x3]
    %888 = vrot.lane.b32.xlu0 %v885, 32
    %v889 = vpop.permute.xlu0 %888
    %v891 = vsel %vm92, %v889, 0
    %893 = vmatpush.bf16.msra.mxu0 0
    %894 = vmatpush.bf16.msra.mxu0 0
    %895 = vmatpush.bf16.msra.mxu0 0
    %896 = vmatpush.bf16.msra.mxu0 0
    %897 = vmatpush.bf16.msra.mxu0 0
    %898 = vmatpush.bf16.msra.mxu0 0
    %899 = vmatpush.bf16.msra.mxu0 %v575
    %900 = vmatpush.bf16.msra.mxu0 %v574
    %901 = vmatmul.bf16.gmra.mxu0 %v891
    %v902 = vpop.f32.mrf.mxu0
    %v903 = vadd.f32 0.0, %v902
    %v904 = vpop.f32.mrf.mxu0
    %905 = vdwg.mxu0
    %v906 = vadd.f32 %v886, %v903
    %v907 = vmul.f32 %v906, 0.5
    %v908 = vsel %vm38, %v906, %v907
    %v909 = vtanh.pop %v908
    %v910 = vmul.f32 %v909, 0.5
    %v911 = vadd.f32 %v910, 0.5
    %v912 = vsel %vm38, %v909, %v911
    %v913 = vmul.f32 %v912, %v878
    %915 = vrot.lane.b32.xlu0 %v912, 64
    %v916 = vpop.permute.xlu0 %915
    %v918 = vmul.f32 %v912, %v916
    %920 = vrot.lane.b32.xlu0 %v918, 32
    %v921 = vpop.permute.xlu0 %920
    %v923 = vadd.f32 %v913, %v921
    %v924 = vtanh.pop %v923
    %926 = vrot.lane.b32.xlu0 %v924, 64
    %v927 = vpop.permute.xlu0 %926
    %v929 = vmul.f32 %v912, %v927
    %v930 = vpack.c.bf16 %v929, %v929
    %v932 = vrot.slane %v930, 2
    %v935 = vsel %vm59, %v930, %v932
    %v937 = vrot.slane %v935, 7
    %938 = vrot.lane.b32.xlu0 %v937, 32
    %v939 = vpop.permute.xlu0 %938
    %941 = vst.msk [vmem:[#allocation3] sm:$0x2] %vm191, %v939
    %v942 = vld [vmem:[#allocation3] sm:$0x3]
    %v943 = vld [vmem:[%s7] sm:$0xf]
    %v944 = vld [vmem:[%s7 + $0x4] sm:$0xf]
    %v945 = vld [vmem:[%s7 + $0x8] sm:$0xf]
    %v946 = vld [vmem:[%s7 + $0xc] sm:$0xf]
    %v947 = vld [vmem:[%s8] sm:$0x1]
    %v949 = vperm.slane %v947, 0
    %v955 = vunpack.c.l.b16 %v943
    %v956 = vunpack.c.l.b16 %v944
    %v957 = vunpack.c.l.b16 %v945
    %v958 = vunpack.c.l.b16 %v946
    %v959 = vpack.c.b16 %v956, %v955
    %v960 = vpack.c.b16 %v958, %v957
    %v964 = vsel %vm92, %v942, 0
    %966 = vmatpush.bf16.msra.mxu0 0
    %967 = vmatpush.bf16.msra.mxu0 0
    %968 = vmatpush.bf16.msra.mxu0 0
    %969 = vmatpush.bf16.msra.mxu0 0
    %970 = vmatpush.bf16.msra.mxu0 0
    %971 = vmatpush.bf16.msra.mxu0 0
    %972 = vmatpush.bf16.msra.mxu0 %v960
    %973 = vmatpush.bf16.msra.mxu0 %v959
    %974 = vmatmul.bf16.gmra.mxu0 %v964
    %v975 = vpop.f32.mrf.mxu0
    %v976 = vadd.f32 %v949, %v975
    %v977 = vpop.f32.mrf.mxu0
    %978 = vdwg.mxu0
    %979 = vst [vmem:[#allocation5] sm:$0xf] %v976
    // Predicated region
    $region38: #{lstm_model_forward.1} parent=1 // pred_check
      _
    $region39: #{lstm_model_forward.1} parent=1 // pred_check_branch
      %981 = sbr.rel (0) target = $region41
    $region40: #{lstm_model_forward.1} parent=1 // pred_region
      %983 = vsyncadd [#allocation6], 0
      %s985 = sshll.u32 [#allocation5], 4
      %s986 = int_to_ptr.vmem [resolvable:$true] %s985
      %s987 = sshll.u32 %s9, 4
      %s988 = int_to_ptr.hbm [resolvable:$true] %s987
      %990 = dma.vmem_to_hbm [thread:$0]  %s986, 64, %s988, [#allocation6]
    $region41: #{lstm_model_forward.1} parent=1 // pred_fallthru
      _
    // Predicated region
    $region42: #{lstm_model_forward.1} parent=1 // pred_check
      _
    $region43: #{lstm_model_forward.1} parent=1 // pred_check_branch
      %992 = sbr.rel (0) target = $region45
    $region44: #{lstm_model_forward.1} parent=1 // pred_region
      %994 = dma.done [#allocation6], 64
    $region45: #{lstm_model_forward.1} parent=1 // pred_fallthru
      _
    %995 = vsyncpa [#allocation6], 1

</llo_original>
